<compile_context>
chip_gen: v5e
topology: v5e:2x2
jax: 0.10.0
libtpu: 0.0.40
codegen_flags: <defaults>
</compile_context>

<pallas_src>
import functools

import jax
import jax.numpy as jnp
from jax import lax
from jax.experimental import pallas as pl
from jax.experimental.pallas import tpu as pltpu

# Large finite negative bias. PyTorch uses -inf, which makes fully-masked rows
# NaN after softmax; with -1e30 a fully-masked row yields a uniform
# distribution instead (no NaN hazard). Documented divergence.
_NEG_BIG = -1e30


def _sdpa_kernel(q_ref, k_ref, v_ref, mask_ref, o_ref,
                 m_sc, l_sc, acc_sc, *, inv_temper):
    """One (batch, q-block, kv-block) grid step of flash-style SDPA.

    q_ref    : (1, tq, d_k)  bf16
    k_ref    : (1, tk, d_k)  bf16
    v_ref    : (1, tk, d_v)  bf16
    mask_ref : (1, tq, tk)   int8, nonzero where attention is disallowed
    o_ref    : (1, tq, d_v)  output dtype
    m_sc     : (tq, 1)  f32  running row max
    l_sc     : (tq, 1)  f32  running row denominator
    acc_sc   : (tq, d_v) f32 running numerator
    """
    kv = pl.program_id(2)

    @pl.when(kv == 0)
    def _init():
        m_sc[...] = jnp.full_like(m_sc, -jnp.inf)
        l_sc[...] = jnp.zeros_like(l_sc)
        acc_sc[...] = jnp.zeros_like(acc_sc)

    # Fold 1/sqrt(d_k) into the (tq, d_k) q tile (8x fewer elements than the
    # (tq, tk) logit tile). Python float is weakly typed -> q stays bf16.
    q = q_ref[0] * inv_temper          # (tq, d_k)
    k = k_ref[0]                       # (tk, d_k)
    v = v_ref[0]                       # (tk, d_v)
    masked = mask_ref[0] != 0          # (tq, tk) bool

    # q @ k^T (contract on d_k) on the MXU with f32 accumulation.
    s = lax.dot_general(q, k, (((1,), (1,)), ((), ())),
                        preferred_element_type=jnp.float32)
    s = jnp.where(masked, _NEG_BIG, s)  # one vselect per logit

    # Online (flash) softmax update; all stats in f32.
    m_prev = m_sc[...]                                    # (tq, 1)
    m_new = jnp.maximum(m_prev, jnp.max(s, axis=-1, keepdims=True))
    alpha = jnp.exp(m_prev - m_new)                       # rescale old stats
    p = jnp.exp(s - m_new)                                # (tq, tk) f32

    l_sc[...] = alpha * l_sc[...] + jnp.sum(p, axis=-1, keepdims=True)
    acc_sc[...] = alpha * acc_sc[...] + jnp.dot(
        p.astype(v.dtype), v, preferred_element_type=jnp.float32)
    m_sc[...] = m_new

    @pl.when(kv == pl.num_programs(2) - 1)
    def _finalize():
        inv_l = pl.reciprocal(l_sc[...], approx=True)     # EUP slot, ~free
        o_ref[0] = (acc_sc[...] * inv_l).astype(o_ref.dtype)


def scaled_dot_product_attention(q, k, v, attn_mask, *,
                                 block_q=128, block_k=256,
                                 compute_dtype=jnp.bfloat16):
    """q: (B, Lq, d_k), k: (B, Lk, d_k), v: (B, Lk, d_v),
    attn_mask: (B, Lq, Lk) bool / 0-1 (True/1 = masked)."""
    B, Lq, d_k = q.shape
    _, Lk, d_v = v.shape
    assert k.shape == (B, Lk, d_k)
    assert attn_mask.shape == (B, Lq, Lk)

    tq = min(block_q, Lq)
    tk = min(block_k, Lk)
    assert Lq % tq == 0 and Lk % tk == 0, "seq lens must divide block sizes"
    # (8, 128) layout constraint: block dims are multiples or the full extent.
    assert (tk % 128 == 0) or (tk == Lk)
    assert (tq % 8 == 0) or (tq == Lq)

    out_dtype = q.dtype
    # bf16 operands: fast MXU path and half the q/k/v HBM traffic; softmax
    # stats and accumulation stay f32 inside the kernel.
    q = q.astype(compute_dtype)
    k = k.astype(compute_dtype)
    v = v.astype(compute_dtype)
    # int8 mask: 4x less mask DMA than f32.
    mask_i8 = attn_mask.astype(jnp.int8)

    inv_temper = 1.0 / (float(d_k) ** 0.5)
    kernel = functools.partial(_sdpa_kernel, inv_temper=inv_temper)

    grid = (B, Lq // tq, Lk // tk)

    return pl.pallas_call(
        kernel,
        out_shape=jax.ShapeDtypeStruct((B, Lq, d_v), out_dtype),
        grid_spec=pltpu.PrefetchScalarGridSpec(
            num_scalar_prefetch=0,
            grid=grid,
            in_specs=[
                pl.BlockSpec((1, tq, d_k), lambda b, qi, ki: (b, qi, 0)),
                pl.BlockSpec((1, tk, d_k), lambda b, qi, ki: (b, ki, 0)),
                pl.BlockSpec((1, tk, d_v), lambda b, qi, ki: (b, ki, 0)),
                pl.BlockSpec((1, tq, tk), lambda b, qi, ki: (b, qi, ki)),
            ],
            out_specs=pl.BlockSpec((1, tq, d_v), lambda b, qi, ki: (b, qi, 0)),
            scratch_shapes=[
                pltpu.VMEM((tq, 1), jnp.float32),    # running max
                pltpu.VMEM((tq, 1), jnp.float32),    # running denom
                pltpu.VMEM((tq, d_v), jnp.float32),  # running numerator
            ],
        ),
        compiler_params=pltpu.CompilerParams(
            dimension_semantics=("parallel", "parallel", "arbitrary"),
            vmem_limit_bytes=32 * 1024 * 1024,
        ),
    )(q, k, v, mask_i8)


def _sdpa_reference(q, k, v, attn_mask):
    scale = 1.0 / (float(q.shape[-1]) ** 0.5)
    s = jnp.einsum('bqd,bkd->bqk', q, k) * scale
    s = jnp.where(attn_mask, _NEG_BIG, s)
    p = jax.nn.softmax(s, axis=-1)
    return jnp.einsum('bqk,bkd->bqd', p, v)


if __name__ == "__main__":
    B, Lq, Lk, d_k, d_v = 2, 256, 256, 32, 32

    key = jax.random.PRNGKey(0)
    kq, kk, kv = jax.random.split(key, 3)
    q = jax.random.normal(kq, (B, Lq, d_k), jnp.float32)
    k = jax.random.normal(kk, (B, Lk, d_k), jnp.float32)
    v = jax.random.normal(kv, (B, Lk, d_v), jnp.float32)

    # Key-padding style mask: last 32 key positions masked for every query
    # (no row is fully masked).
    attn_mask = jnp.zeros((B, Lq, Lk), jnp.bool_).at[:, :, Lk - 32:].set(True)

    out = scaled_dot_product_attention(q, k, v, attn_mask,
                                       block_q=128, block_k=256)
    out = jax.block_until_ready(out)

    assert out.shape == (B, Lq, d_v)
    assert bool(jnp.all(jnp.isfinite(out)))

    ref = _sdpa_reference(q, k, v, attn_mask)
    # Tolerance accounts for bf16 q/k/v operands (softmax/accum stay f32).
    assert bool(jnp.allclose(out, ref, atol=2e-2, rtol=2e-2)), (
        float(jnp.max(jnp.abs(out - ref))))

    print("KERNEL_OK")
</pallas_src>

<mosaic_0001>
module attributes {stable_mosaic.version = 11 : i64} {
  func.func @_sdpa_kernel(%arg0: i32, %arg1: i32, %arg2: i32, %arg3: memref<1x128x32xbf16, #tpu.memory_space<vmem>>, %arg4: memref<1x256x32xbf16, #tpu.memory_space<vmem>>, %arg5: memref<1x256x32xbf16, #tpu.memory_space<vmem>>, %arg6: memref<1x128x256xi8, #tpu.memory_space<vmem>>, %arg7: memref<1x128x32xf32, #tpu.memory_space<vmem>>, %arg8: memref<128x1xf32, #tpu.memory_space<vmem>>, %arg9: memref<128x1xf32, #tpu.memory_space<vmem>>, %arg10: memref<128x32xf32, #tpu.memory_space<vmem>>) attributes {dimension_semantics = [#tpu.dimension_semantics<parallel>, #tpu.dimension_semantics<parallel>, #tpu.dimension_semantics<arbitrary>], iteration_bounds = array<i64: 2, 2, 1>, scalar_prefetch = 0 : i64, scratch_operands = 3 : i64, tpu.core_type = #tpu.core_type<tc>, window_params = [{transform_indices = @transform_0, window_bounds = array<i64: 1, 128, 32>}, {transform_indices = @transform_1, window_bounds = array<i64: 1, 256, 32>}, {transform_indices = @transform_2, window_bounds = array<i64: 1, 256, 32>}, {transform_indices = @transform_3, window_bounds = array<i64: 1, 128, 256>}, {transform_indices = @transform_4, window_bounds = array<i64: 1, 128, 32>}]} {
    %c0_i32 = arith.constant 0 : i32
    %0 = arith.cmpi eq, %arg2, %c0_i32 : i32
    %1 = arith.extui %0 : i1 to i32
    %c0_i32_0 = arith.constant 0 : i32
    %2 = arith.cmpi ne, %1, %c0_i32_0 : i32
    scf.if %2 {
      %cst_31 = arith.constant 0xFF800000 : f32
      %44 = vector.broadcast %cst_31 : f32 to vector<128x1xf32>
      %c0_32 = arith.constant 0 : index
      %c0_33 = arith.constant 0 : index
      %45 = vector.load %arg8[%c0_32, %c0_33] : memref<128x1xf32, #tpu.memory_space<vmem>>, vector<128x1xf32>
      tpu.vector_store %arg8[%c0_32, %c0_33], %44 {strides = array<i32>} : memref<128x1xf32, #tpu.memory_space<vmem>>, vector<128x1xf32>,
      %cst_34 = arith.constant 0.000000e+00 : f32
      %46 = vector.broadcast %cst_34 : f32 to vector<128x1xf32>
      %c0_35 = arith.constant 0 : index
      %c0_36 = arith.constant 0 : index
      %47 = vector.load %arg9[%c0_35, %c0_36] : memref<128x1xf32, #tpu.memory_space<vmem>>, vector<128x1xf32>
      tpu.vector_store %arg9[%c0_35, %c0_36], %46 {strides = array<i32>} : memref<128x1xf32, #tpu.memory_space<vmem>>, vector<128x1xf32>,
      %cst_37 = arith.constant 0.000000e+00 : f32
      %48 = vector.broadcast %cst_37 : f32 to vector<128x32xf32>
      %c0_38 = arith.constant 0 : index
      %c0_39 = arith.constant 0 : index
      %49 = vector.load %arg10[%c0_38, %c0_39] : memref<128x32xf32, #tpu.memory_space<vmem>>, vector<128x32xf32>
      tpu.vector_store %arg10[%c0_38, %c0_39], %48 {strides = array<i32>} : memref<128x32xf32, #tpu.memory_space<vmem>>, vector<128x32xf32>,
    } else {
    }
    %c0 = arith.constant 0 : index
    %c0_1 = arith.constant 0 : index
    %c0_2 = arith.constant 0 : index
    %3 = vector.load %arg3[%c0, %c0_1, %c0_2] : memref<1x128x32xbf16, #tpu.memory_space<vmem>>, vector<1x128x32xbf16>
    %4 = vector.shape_cast %3 : vector<1x128x32xbf16> to vector<128x32xbf16>
    %cst = arith.constant 1.767580e-01 : bf16
    %5 = vector.broadcast %cst : bf16 to vector<128x32xbf16>
    %6 = arith.mulf %4, %5 : vector<128x32xbf16>
    %c0_3 = arith.constant 0 : index
    %c0_4 = arith.constant 0 : index
    %c0_5 = arith.constant 0 : index
    %7 = vector.load %arg4[%c0_3, %c0_4, %c0_5] : memref<1x256x32xbf16, #tpu.memory_space<vmem>>, vector<1x256x32xbf16>
    %8 = vector.shape_cast %7 : vector<1x256x32xbf16> to vector<256x32xbf16>
    %c0_6 = arith.constant 0 : index
    %c0_7 = arith.constant 0 : index
    %c0_8 = arith.constant 0 : index
    %9 = vector.load %arg5[%c0_6, %c0_7, %c0_8] : memref<1x256x32xbf16, #tpu.memory_space<vmem>>, vector<1x256x32xbf16>
    %10 = vector.shape_cast %9 : vector<1x256x32xbf16> to vector<256x32xbf16>
    %c0_9 = arith.constant 0 : index
    %c0_10 = arith.constant 0 : index
    %c0_11 = arith.constant 0 : index
    %11 = vector.load %arg6[%c0_9, %c0_10, %c0_11] : memref<1x128x256xi8, #tpu.memory_space<vmem>>, vector<1x128x256xi8>
    %12 = vector.shape_cast %11 : vector<1x128x256xi8> to vector<128x256xi8>
    %c0_i8 = arith.constant 0 : i8
    %13 = vector.broadcast %c0_i8 : i8 to vector<128x256xi8>
    %14 = arith.cmpi ne, %12, %13 : vector<128x256xi8>
    %cst_12 = arith.constant dense<0.000000e+00> : vector<128x256xf32>
    %15 = tpu.matmul %6, %8, %cst_12 {dimension_numbers = #tpu.dot_dimension_numbers<[1], [1], [0], [0], [0, 0, 1, 0], [], []>} : vector<128x32xbf16>, vector<256x32xbf16>, vector<128x256xf32> -> vector<128x256xf32>
    %cst_13 = arith.constant -1.000000e+30 : f32
    %16 = vector.broadcast %cst_13 : f32 to vector<128x256xf32>
    %17 = arith.select %14, %16, %15 : vector<128x256xi1>, vector<128x256xf32>
    %c0_14 = arith.constant 0 : index
    %c0_15 = arith.constant 0 : index
    %18 = vector.load %arg8[%c0_14, %c0_15] : memref<128x1xf32, #tpu.memory_space<vmem>>, vector<128x1xf32>
    %cst_16 = arith.constant dense<0xFF800000> : vector<128xf32>
    %19 = vector.multi_reduction <maximumf>, %17, %cst_16 [1] : vector<128x256xf32> to vector<128xf32>
    %20 = vector.shape_cast %19 : vector<128xf32> to vector<128x1xf32>
    %21 = arith.maximumf %18, %20 : vector<128x1xf32>
    %22 = arith.subf %18, %21 : vector<128x1xf32>
    %23 = math.exp %22 : vector<128x1xf32>
    %24 = vector.broadcast %21 : vector<128x1xf32> to vector<128x256xf32>
    %25 = arith.subf %17, %24 : vector<128x256xf32>
    %26 = math.exp %25 : vector<128x256xf32>
    %c0_17 = arith.constant 0 : index
    %c0_18 = arith.constant 0 : index
    %27 = vector.load %arg9[%c0_17, %c0_18] : memref<128x1xf32, #tpu.memory_space<vmem>>, vector<128x1xf32>
    %28 = arith.mulf %23, %27 : vector<128x1xf32>
    %cst_19 = arith.constant dense<0.000000e+00> : vector<128xf32>
    %29 = vector.multi_reduction <add>, %26, %cst_19 [1] : vector<128x256xf32> to vector<128xf32>
    %30 = vector.shape_cast %29 : vector<128xf32> to vector<128x1xf32>
    %31 = arith.addf %28, %30 : vector<128x1xf32>
    %c0_20 = arith.constant 0 : index
    %c0_21 = arith.constant 0 : index
    %32 = vector.load %arg9[%c0_20, %c0_21] : memref<128x1xf32, #tpu.memory_space<vmem>>, vector<128x1xf32>
    tpu.vector_store %arg9[%c0_20, %c0_21], %31 {strides = array<i32>} : memref<128x1xf32, #tpu.memory_space<vmem>>, vector<128x1xf32>,
    %c0_22 = arith.constant 0 : index
    %c0_23 = arith.constant 0 : index
    %33 = vector.load %arg10[%c0_22, %c0_23] : memref<128x32xf32, #tpu.memory_space<vmem>>, vector<128x32xf32>
    %34 = vector.broadcast %23 : vector<128x1xf32> to vector<128x32xf32>
    %35 = arith.mulf %34, %33 : vector<128x32xf32>
    %36 = arith.truncf %26 : vector<128x256xf32> to vector<128x256xbf16>
    %cst_24 = arith.constant dense<0.000000e+00> : vector<128x32xf32>
    %37 = tpu.matmul %36, %10, %cst_24 {dimension_numbers = #tpu.dot_dimension_numbers<[1], [0], [0], [1], [0, 0, 1, 1], [], []>} : vector<128x256xbf16>, vector<256x32xbf16>, vector<128x32xf32> -> vector<128x32xf32>
    %38 = arith.addf %35, %37 : vector<128x32xf32>
    %c0_25 = arith.constant 0 : index
    %c0_26 = arith.constant 0 : index
    %39 = vector.load %arg10[%c0_25, %c0_26] : memref<128x32xf32, #tpu.memory_space<vmem>>, vector<128x32xf32>
    tpu.vector_store %arg10[%c0_25, %c0_26], %38 {strides = array<i32>} : memref<128x32xf32, #tpu.memory_space<vmem>>, vector<128x32xf32>,
    %c0_27 = arith.constant 0 : index
    %c0_28 = arith.constant 0 : index
    %40 = vector.load %arg8[%c0_27, %c0_28] : memref<128x1xf32, #tpu.memory_space<vmem>>, vector<128x1xf32>
    tpu.vector_store %arg8[%c0_27, %c0_28], %21 {strides = array<i32>} : memref<128x1xf32, #tpu.memory_space<vmem>>, vector<128x1xf32>,
    %c0_i32_29 = arith.constant 0 : i32
    %41 = arith.cmpi eq, %arg2, %c0_i32_29 : i32
    %42 = arith.extui %41 : i1 to i32
    %c0_i32_30 = arith.constant 0 : i32
    %43 = arith.cmpi ne, %42, %c0_i32_30 : i32
    scf.if %43 {
      %c0_31 = arith.constant 0 : index
      %c0_32 = arith.constant 0 : index
      %44 = vector.load %arg9[%c0_31, %c0_32] : memref<128x1xf32, #tpu.memory_space<vmem>>, vector<128x1xf32>
      %45 = tpu.reciprocal %44 {approx = true} : vector<128x1xf32> -> vector<128x1xf32>
      %c0_33 = arith.constant 0 : index
      %c0_34 = arith.constant 0 : index
      %46 = vector.load %arg10[%c0_33, %c0_34] : memref<128x32xf32, #tpu.memory_space<vmem>>, vector<128x32xf32>
      %47 = vector.broadcast %45 : vector<128x1xf32> to vector<128x32xf32>
      %48 = arith.mulf %46, %47 : vector<128x32xf32>
      %c0_35 = arith.constant 0 : index
      %c0_36 = arith.constant 0 : index
      %c0_37 = arith.constant 0 : index
      %49 = vector.load %arg7[%c0_35, %c0_36, %c0_37] : memref<1x128x32xf32, #tpu.memory_space<vmem>>, vector<1x128x32xf32>
      %50 = vector.shape_cast %49 : vector<1x128x32xf32> to vector<128x32xf32>
      %51 = vector.shape_cast %48 : vector<128x32xf32> to vector<1x128x32xf32>
      tpu.vector_store %arg7[%c0_35, %c0_36, %c0_37], %51 {strides = array<i32>} : memref<1x128x32xf32, #tpu.memory_space<vmem>>, vector<1x128x32xf32>,
    } else {
    }
    return
  }
  func.func @transform_0(%arg0: i32, %arg1: i32, %arg2: i32) -> (i32, i32, i32) {
    %c0_i32 = arith.constant 0 : i32
    %c0_i32_0 = arith.constant 0 : i32
    return %arg0, %arg1, %c0_i32 : i32, i32, i32
  }
  func.func @transform_1(%arg0: i32, %arg1: i32, %arg2: i32) -> (i32, i32, i32) {
    %c0_i32 = arith.constant 0 : i32
    %c0_i32_0 = arith.constant 0 : i32
    return %arg0, %arg2, %c0_i32 : i32, i32, i32
  }
  func.func @transform_2(%arg0: i32, %arg1: i32, %arg2: i32) -> (i32, i32, i32) {
    %c0_i32 = arith.constant 0 : i32
    %c0_i32_0 = arith.constant 0 : i32
    return %arg0, %arg2, %c0_i32 : i32, i32, i32
  }
  func.func @transform_3(%arg0: i32, %arg1: i32, %arg2: i32) -> (i32, i32, i32) {
    %c0_i32 = arith.constant 0 : i32
    return %arg0, %arg1, %arg2 : i32, i32, i32
  }
  func.func @transform_4(%arg0: i32, %arg1: i32, %arg2: i32) -> (i32, i32, i32) {
    %c0_i32 = arith.constant 0 : i32
    %c0_i32_0 = arith.constant 0 : i32
    return %arg0, %arg1, %c0_i32 : i32, i32, i32
  }
}

</mosaic_0001>

<llo_original>
// kernel: tpu_custom_call.1
$region0: #{tpu_custom_call.1}
  #allocation0 [shape = 'u32[]', space=smem, size = 0x4, offset = 0x4, fixed_abs, tag = 'smem constant byte address 0x4 - core index']
  #allocation1 [shape = 'u32[72,128]{1,0:T(1,128)}', space=vmem, size = 0x9000, scoped, tag = 'internal scratch']
  #allocation2 [shape = 'f32[128,1]{1,0:T(8,128)}', space=vmem, size = 0x10000, scoped, tag = 'scratch operand']
  #allocation3 [shape = 'f32[128,1]{1,0:T(8,128)}', space=vmem, size = 0x10000, scoped, tag = 'scratch operand']
  #allocation4 [shape = 'f32[128,32]{1,0:T(8,128)}', space=vmem, size = 0x10000, scoped, tag = 'scratch operand']
  %s0 = inlined_call_operand.vmem [shape: bf16[2,256,32], index: 0, kind: input, shape index: {}]
  %s1 = inlined_call_operand.vmem [shape: bf16[2,256,32], index: 1, kind: input, shape index: {}]
  %s2 = inlined_call_operand.vmem [shape: bf16[2,256,32], index: 2, kind: input, shape index: {}]
  %s3 = inlined_call_operand.vmem [shape: s8[2,256,256], index: 3, kind: input, shape index: {}]
  %s4 = inlined_call_operand.vmem [shape: f32[2,256,32], index: 4, kind: output, shape index: {}]
  %s5 = sld [smem:[#allocation0]]
  $region57: #{tpu_custom_call.1} parent=0
    _
  %s7 = ssub.s32 1, %s5
  %s8 = scalar_select 0, %s7, %s5
  loop: start=0, step=1, limit=6
  $region2: #{tpu_custom_call.1} parent=0 // loop_pre_header
    _
  $region3: #{tpu_custom_call.1} parent=0 // loop_header
    %s10 = sphi 0, %s14
    %p11 = scmp.ge.s32.totalorder %s10, 6
    %s17 = sphi 0, %s36
    %s18 = sphi 0, %s32
    %s19 = sphi 0, %s28
    %s20 = sphi 0, %s17
    %s21 = sphi 0, %s18
    %s22 = sphi 0, %s19
    %s23 = sphi 0, %s20
    %s24 = sphi 0, %s21
    %s25 = sphi 0, %s22
    %s41 = sphi 0, %s43
    %s44 = sphi 0, %s41
    %s45 = sphi 0, %s44
    %s61 = sphi 0, %s45
    %s69 = sphi 0, %s71
    %s72 = sphi 0, %s69
    %s73 = sphi 0, %s72
    %s89 = sphi 0, %s73
    %s97 = sphi 0, %s99
    %s100 = sphi 0, %s97
    %s101 = sphi 0, %s100
    %s117 = sphi 0, %s101
    %s127 = sphi 0, %s129
    %s130 = sphi 0, %s127
    %s131 = sphi 0, %s130
    %s147 = sphi 0, %s131
    %s155 = sphi 0, %s157
    %s158 = sphi 0, %s155
    %s159 = sphi 0, %s158
    %s175 = sphi 0, %s159
  $region4: #{tpu_custom_call.1} parent=0 // loop_header_branch
    %13 = sbr.rel (%p11) target = $region8
  $region5: #{tpu_custom_call.1} parent=0 // loop_body
    %s15 = ssub.s32 %s10, 1
    %s16 = ssub.s32 %s10, 2
    %s26 = sadd.s32 1, %s19
    %p27 = scmp.ge.s32.totalorder %s26, 1
    %s28 = scalar_select %p27, 0, %s26
    %s29 = sadd.s32 1, %s18
    %s30 = scalar_select %p27, %s29, %s18
    %p31 = scmp.ge.s32.totalorder %s30, 2
    %s32 = scalar_select %p31, 0, %s30
    %s33 = sadd.s32 1, %s17
    %s34 = scalar_select %p31, %s33, %s17
    %p35 = scmp.ge.s32.totalorder %s34, 2
    %s36 = scalar_select %p35, 0, %s34
    %s37 = ssub.s32 %s17, %s36
    %s38 = ssub.s32 %s18, %s32
    %s39 = sor.u32 %s37, %s38
    %p40 = scmp.eq.s32.totalorder %s39, 0
    %s42 = sadd.s32 %s41, 1
    %s43 = scalar_select %p40, %s41, %s42
    %p46 = pneg %p40
    %p47 = scmp.eq.s32.totalorder %s10, 3
    %p48 = por %p46, %p47
    %p49 = scmp.ne.s32.totalorder %s41, %s44
    %p50 = scmp.eq.s32.totalorder %s10, 0
    %p51 = por %p49, %p50
    %p52 = scmp.ne.s32.totalorder %s41, %s44
    %p53 = scmp.eq.s32.totalorder %s15, 3
    %p54 = por %p52, %p53
    %p55 = scmp.ne.s32.totalorder %s44, %s45
    %p56 = scmp.eq.s32.totalorder %s15, 0
    %p57 = por %p55, %p56
    %p58 = scmp.ne.s32.totalorder %s44, %s45
    %p59 = scmp.eq.s32.totalorder %s16, 3
    %p60 = por %p58, %p59
    %p62 = scmp.ne.s32.totalorder %s45, %s61
    %p63 = scmp.eq.s32.totalorder %s16, 0
    %p64 = por %p62, %p63
    %s65 = ssub.s32 %s17, %s36
    %s66 = ssub.s32 %s19, %s28
    %s67 = sor.u32 %s65, %s66
    %p68 = scmp.eq.s32.totalorder %s67, 0
    %s70 = sadd.s32 %s69, 1
    %s71 = scalar_select %p68, %s69, %s70
    %p74 = pneg %p68
    %p75 = scmp.eq.s32.totalorder %s10, 3
    %p76 = por %p74, %p75
    %p77 = scmp.ne.s32.totalorder %s69, %s72
    %p78 = scmp.eq.s32.totalorder %s10, 0
    %p79 = por %p77, %p78
    %p80 = scmp.ne.s32.totalorder %s69, %s72
    %p81 = scmp.eq.s32.totalorder %s15, 3
    %p82 = por %p80, %p81
    %p83 = scmp.ne.s32.totalorder %s72, %s73
    %p84 = scmp.eq.s32.totalorder %s15, 0
    %p85 = por %p83, %p84
    %p86 = scmp.ne.s32.totalorder %s72, %s73
    %p87 = scmp.eq.s32.totalorder %s16, 3
    %p88 = por %p86, %p87
    %p90 = scmp.ne.s32.totalorder %s73, %s89
    %p91 = scmp.eq.s32.totalorder %s16, 0
    %p92 = por %p90, %p91
    %s93 = ssub.s32 %s17, %s36
    %s94 = ssub.s32 %s19, %s28
    %s95 = sor.u32 %s93, %s94
    %p96 = scmp.eq.s32.totalorder %s95, 0
    %s98 = sadd.s32 %s97, 1
    %s99 = scalar_select %p96, %s97, %s98
    %p102 = pneg %p96
    %p103 = scmp.eq.s32.totalorder %s10, 3
    %p104 = por %p102, %p103
    %p105 = scmp.ne.s32.totalorder %s97, %s100
    %p106 = scmp.eq.s32.totalorder %s10, 0
    %p107 = por %p105, %p106
    %p108 = scmp.ne.s32.totalorder %s97, %s100
    %p109 = scmp.eq.s32.totalorder %s15, 3
    %p110 = por %p108, %p109
    %p111 = scmp.ne.s32.totalorder %s100, %s101
    %p112 = scmp.eq.s32.totalorder %s15, 0
    %p113 = por %p111, %p112
    %p114 = scmp.ne.s32.totalorder %s100, %s101
    %p115 = scmp.eq.s32.totalorder %s16, 3
    %p116 = por %p114, %p115
    %p118 = scmp.ne.s32.totalorder %s101, %s117
    %p119 = scmp.eq.s32.totalorder %s16, 0
    %p120 = por %p118, %p119
    %s121 = ssub.s32 %s17, %s36
    %s122 = ssub.s32 %s18, %s32
    %s123 = sor.u32 %s121, %s122
    %s124 = ssub.s32 %s19, %s28
    %s125 = sor.u32 %s123, %s124
    %p126 = scmp.eq.s32.totalorder %s125, 0
    %s128 = sadd.s32 %s127, 1
    %s129 = scalar_select %p126, %s127, %s128
    %p132 = pneg %p126
    %p133 = scmp.eq.s32.totalorder %s10, 3
    %p134 = por %p132, %p133
    %p135 = scmp.ne.s32.totalorder %s127, %s130
    %p136 = scmp.eq.s32.totalorder %s10, 0
    %p137 = por %p135, %p136
    %p138 = scmp.ne.s32.totalorder %s127, %s130
    %p139 = scmp.eq.s32.totalorder %s15, 3
    %p140 = por %p138, %p139
    %p141 = scmp.ne.s32.totalorder %s130, %s131
    %p142 = scmp.eq.s32.totalorder %s15, 0
    %p143 = por %p141, %p142
    %p144 = scmp.ne.s32.totalorder %s130, %s131
    %p145 = scmp.eq.s32.totalorder %s16, 3
    %p146 = por %p144, %p145
    %p148 = scmp.ne.s32.totalorder %s131, %s147
    %p149 = scmp.eq.s32.totalorder %s16, 0
    %p150 = por %p148, %p149
    %s151 = ssub.s32 %s17, %s36
    %s152 = ssub.s32 %s18, %s32
    %s153 = sor.u32 %s151, %s152
    %p154 = scmp.eq.s32.totalorder %s153, 0
    %s156 = sadd.s32 %s155, 1
    %s157 = scalar_select %p154, %s155, %s156
    %p160 = pneg %p154
    %p161 = scmp.eq.s32.totalorder %s10, 3
    %p162 = por %p160, %p161
    %p163 = scmp.ne.s32.totalorder %s155, %s158
    %p164 = scmp.eq.s32.totalorder %s10, 0
    %p165 = por %p163, %p164
    %p166 = scmp.ne.s32.totalorder %s155, %s158
    %p167 = scmp.eq.s32.totalorder %s15, 3
    %p168 = por %p166, %p167
    %p169 = scmp.ne.s32.totalorder %s158, %s159
    %p170 = scmp.eq.s32.totalorder %s15, 0
    %p171 = por %p169, %p170
    %p172 = scmp.ne.s32.totalorder %s158, %s159
    %p173 = scmp.eq.s32.totalorder %s16, 3
    %p174 = por %p172, %p173
    %p176 = scmp.ne.s32.totalorder %s159, %s175
    %p177 = scmp.eq.s32.totalorder %s16, 0
    %p178 = por %p176, %p177
    %p179 = scmp.le.s32.totalorder 1, %s10
    %p180 = scmp.lt.s32.totalorder %s10, 5
    %p181 = pnand %p179, %p180
    %p182 = pneg %p181
    // Predicated region
    $region9: #{tpu_custom_call.1} parent=5 // pred_check
      _
    $region10: #{tpu_custom_call.1} parent=5 // pred_check_branch
      %184 = sbr.rel (%p181) target = $region12
    $region11: #{tpu_custom_call.1} parent=5 // pred_region
      %s185 = ssub.s32 %s10, 1
    $region12: #{tpu_custom_call.1} parent=5 // pred_fallthru
      _
    %p186 = scmp.lt.s32.totalorder %s10, 4
    // Predicated region
    $region13: #{tpu_custom_call.1} parent=5 // pred_check
      %p187 = pneg %p186
    $region14: #{tpu_custom_call.1} parent=5 // pred_check_branch
      %189 = sbr.rel (%p187) target = $region16
    $region15: #{tpu_custom_call.1} parent=5 // pred_region
      // Predicated region
      $region17: #{tpu_custom_call.1} parent=15 // pred_check
        %p190 = pneg %p51
      $region18: #{tpu_custom_call.1} parent=15 // pred_check_branch
        %192 = sbr.rel (%p190) target = $region20
      $region19: #{tpu_custom_call.1} parent=15 // pred_region
        %s193 = smul.u32 16, %s18
        %p194 = scmp.lt.s32.totalorder %s17, 1
        %s195 = scalar_select %p194, %s17, 1
        %p196 = scmp.lt.s32.totalorder %s193, 31
        %s197 = scalar_select %p196, %s193, 31
        %s198 = smul.addr %s195, 32
        %s199 = sadd.s32 %s197, %s198
        %s200 = smul.addr %s199, 4
        %s201 = scalar_lea.vmem %s0, %s200
        %s202 = smul.u32 16, %s18
      $region20: #{tpu_custom_call.1} parent=15 // pred_fallthru
        _
      // Predicated region
      $region21: #{tpu_custom_call.1} parent=15 // pred_check
        %p203 = pneg %p79
      $region22: #{tpu_custom_call.1} parent=15 // pred_check_branch
        %205 = sbr.rel (%p203) target = $region24
      $region23: #{tpu_custom_call.1} parent=15 // pred_region
        %s206 = smul.u32 32, %s19
        %p207 = scmp.lt.s32.totalorder %s17, 1
        %s208 = scalar_select %p207, %s17, 1
        %p209 = scmp.lt.s32.totalorder %s206, 31
        %s210 = scalar_select %p209, %s206, 31
        %s211 = smul.addr %s208, 32
        %s212 = sadd.s32 %s210, %s211
        %s213 = smul.addr %s212, 4
        %s214 = scalar_lea.vmem %s1, %s213
        %s215 = smul.u32 32, %s19
      $region24: #{tpu_custom_call.1} parent=15 // pred_fallthru
        _
      // Predicated region
      $region25: #{tpu_custom_call.1} parent=15 // pred_check
        %p216 = pneg %p107
      $region26: #{tpu_custom_call.1} parent=15 // pred_check_branch
        %218 = sbr.rel (%p216) target = $region28
      $region27: #{tpu_custom_call.1} parent=15 // pred_region
        %s219 = smul.u32 32, %s19
        %p220 = scmp.lt.s32.totalorder %s17, 1
        %s221 = scalar_select %p220, %s17, 1
        %p222 = scmp.lt.s32.totalorder %s219, 31
        %s223 = scalar_select %p222, %s219, 31
        %s224 = smul.addr %s221, 32
        %s225 = sadd.s32 %s223, %s224
        %s226 = smul.addr %s225, 4
        %s227 = scalar_lea.vmem %s2, %s226
        %s228 = smul.u32 32, %s19
      $region28: #{tpu_custom_call.1} parent=15 // pred_fallthru
        _
      // Predicated region
      $region29: #{tpu_custom_call.1} parent=15 // pred_check
        %p229 = pneg %p137
      $region30: #{tpu_custom_call.1} parent=15 // pred_check_branch
        %231 = sbr.rel (%p229) target = $region32
      $region31: #{tpu_custom_call.1} parent=15 // pred_region
        %s232 = smul.u32 4, %s18
        %s233 = smul.u32 2, %s19
        %p234 = scmp.lt.s32.totalorder %s17, 1
        %s235 = scalar_select %p234, %s17, 1
        %p236 = scmp.lt.s32.totalorder %s232, 7
        %s237 = scalar_select %p236, %s232, 7
        %p238 = scmp.lt.s32.totalorder %s233, 1
        %s239 = scalar_select %p238, %s233, 1
        %s240 = smul.addr %s237, 2
        %s241 = sadd.s32 %s239, %s240
        %s242 = smul.addr %s235, 16
        %s243 = sadd.s32 %s241, %s242
        %s244 = smul.addr %s243, 8
        %s245 = scalar_lea.vmem %s3, %s244
        %s246 = smul.u32 4, %s18
        %s247 = smul.u32 2, %s19
      $region32: #{tpu_custom_call.1} parent=15 // pred_fallthru
        _
    $region16: #{tpu_custom_call.1} parent=5 // pred_fallthru
      _
    %p248 = scmp.le.s32.totalorder 1, %s10
    %p249 = scmp.lt.s32.totalorder %s10, 5
    %p250 = pnand %p248, %p249
    %p251 = pneg %p250
    // Predicated region
    $region33: #{tpu_custom_call.1} parent=5 // pred_check
      _
    $region34: #{tpu_custom_call.1} parent=5 // pred_check_branch
      %253 = sbr.rel (%p250) target = $region36
    $region35: #{tpu_custom_call.1} parent=5 // pred_region
      %s254 = ssub.s32 %s10, 1
      %s255 = smul.u32 16, %s21
      %p256 = scmp.lt.s32.totalorder %s20, 1
      %s257 = scalar_select %p256, %s20, 1
      %p258 = scmp.lt.s32.totalorder %s255, 31
      %s259 = scalar_select %p258, %s255, 31
      %s260 = smul.addr %s257, 32
      %s261 = sadd.s32 %s259, %s260
      %s262 = smul.addr %s261, 4
      %s263 = scalar_lea.vmem %s0, %s262
      %p264 = pneg %p57
      %p265 = pneg %p54
      %s266 = smul.u32 32, %s22
      %p267 = scmp.lt.s32.totalorder %s20, 1
      %s268 = scalar_select %p267, %s20, 1
      %p269 = scmp.lt.s32.totalorder %s266, 31
      %s270 = scalar_select %p269, %s266, 31
      %s271 = smul.addr %s268, 32
      %s272 = sadd.s32 %s270, %s271
      %s273 = smul.addr %s272, 4
      %s274 = scalar_lea.vmem %s1, %s273
      %p275 = pneg %p85
      %p276 = pneg %p82
      %s277 = smul.u32 32, %s22
      %p278 = scmp.lt.s32.totalorder %s20, 1
      %s279 = scalar_select %p278, %s20, 1
      %p280 = scmp.lt.s32.totalorder %s277, 31
      %s281 = scalar_select %p280, %s277, 31
      %s282 = smul.addr %s279, 32
      %s283 = sadd.s32 %s281, %s282
      %s284 = smul.addr %s283, 4
      %s285 = scalar_lea.vmem %s2, %s284
      %p286 = pneg %p113
      %p287 = pneg %p110
      %s288 = smul.u32 4, %s21
      %s289 = smul.u32 2, %s22
      %p290 = scmp.lt.s32.totalorder %s20, 1
      %s291 = scalar_select %p290, %s20, 1
      %p292 = scmp.lt.s32.totalorder %s288, 7
      %s293 = scalar_select %p292, %s288, 7
      %p294 = scmp.lt.s32.totalorder %s289, 1
      %s295 = scalar_select %p294, %s289, 1
      %s296 = smul.addr %s293, 2
      %s297 = sadd.s32 %s295, %s296
      %s298 = smul.addr %s291, 16
      %s299 = sadd.s32 %s297, %s298
      %s300 = smul.addr %s299, 8
      %s301 = scalar_lea.vmem %s3, %s300
      %p302 = pneg %p143
      %p303 = pneg %p140
      %p304 = pneg %p171
      %p305 = pneg %p168
      %s306 = smul.u32 16, %s21
      %p307 = scmp.lt.s32.totalorder %s20, 1
      %s308 = scalar_select %p307, %s20, 1
      %p309 = scmp.lt.s32.totalorder %s306, 31
      %s310 = scalar_select %p309, %s306, 31
      %s311 = smul.addr %s308, 32
      %s312 = sadd.s32 %s310, %s311
      %s313 = smul.addr %s312, 8
      %s314 = scalar_lea.vmem %s4, %s313
      %s315 = smul.u32 16, %s21
      %p316 = scmp.lt.s32.totalorder %s20, 1
      %s317 = scalar_select %p316, %s20, 1
      %p318 = scmp.lt.s32.totalorder %s315, 31
      %s319 = scalar_select %p318, %s315, 31
      %s320 = smul.addr %s317, 32
      %s321 = sadd.s32 %s319, %s320
      %s322 = smul.addr %s321, 4
      %s323 = scalar_lea.vmem %s0, %s322
      %s324 = smul.u32 16, %s21
      %s325 = smul.u32 32, %s22
      %p326 = scmp.lt.s32.totalorder %s20, 1
      %s327 = scalar_select %p326, %s20, 1
      %p328 = scmp.lt.s32.totalorder %s325, 31
      %s329 = scalar_select %p328, %s325, 31
      %s330 = smul.addr %s327, 32
      %s331 = sadd.s32 %s329, %s330
      %s332 = smul.addr %s331, 4
      %s333 = scalar_lea.vmem %s1, %s332
      %s334 = smul.u32 32, %s22
      %s335 = smul.u32 32, %s22
      %p336 = scmp.lt.s32.totalorder %s20, 1
      %s337 = scalar_select %p336, %s20, 1
      %p338 = scmp.lt.s32.totalorder %s335, 31
      %s339 = scalar_select %p338, %s335, 31
      %s340 = smul.addr %s337, 32
      %s341 = sadd.s32 %s339, %s340
      %s342 = smul.addr %s341, 4
      %s343 = scalar_lea.vmem %s2, %s342
      %s344 = smul.u32 32, %s22
      %s345 = smul.u32 4, %s21
      %s346 = smul.u32 2, %s22
      %p347 = scmp.lt.s32.totalorder %s20, 1
      %s348 = scalar_select %p347, %s20, 1
      %p349 = scmp.lt.s32.totalorder %s345, 7
      %s350 = scalar_select %p349, %s345, 7
      %p351 = scmp.lt.s32.totalorder %s346, 1
      %s352 = scalar_select %p351, %s346, 1
      %s353 = smul.addr %s350, 2
      %s354 = sadd.s32 %s352, %s353
      %s355 = smul.addr %s348, 16
      %s356 = sadd.s32 %s354, %s355
      %s357 = smul.addr %s356, 8
      %s358 = scalar_lea.vmem %s3, %s357
      %s359 = smul.u32 4, %s21
      %s360 = smul.u32 2, %s22
      %s361 = smul.u32 16, %s21
      %p362 = scmp.lt.s32.totalorder %s20, 1
      %s363 = scalar_select %p362, %s20, 1
      %p364 = scmp.lt.s32.totalorder %s361, 31
      %s365 = scalar_select %p364, %s361, 31
      %s366 = smul.addr %s363, 32
      %s367 = sadd.s32 %s365, %s366
      %s368 = smul.addr %s367, 8
      %s369 = scalar_lea.vmem %s4, %s368
      %s370 = smul.u32 16, %s21
      %p373 = scmp.eq.s32.totalorder %s22, 0
      // Predicated region
      $region37: #{tpu_custom_call.1} parent=35 // pred_check
        %p374 = pneg %p373
      $region38: #{tpu_custom_call.1} parent=35 // pred_check_branch
        %376 = sbr.rel (%p374) target = $region40
      $region39: #{tpu_custom_call.1} parent=35 // pred_region
        %vm377 = vcmask 7168
        %378 = vst.msk [vmem:[#allocation2] sm:$0xff] %vm377, -inf
        %379 = vst.msk [vmem:[#allocation2 + $0x8] sm:$0xff] %vm377, -inf
        %380 = vst.msk [vmem:[#allocation2 + $0x10] sm:$0xff] %vm377, -inf
        %381 = vst.msk [vmem:[#allocation2 + $0x18] sm:$0xff] %vm377, -inf
        %382 = vst.msk [vmem:[#allocation2 + $0x20] sm:$0xff] %vm377, -inf
        %383 = vst.msk [vmem:[#allocation2 + $0x28] sm:$0xff] %vm377, -inf
        %384 = vst.msk [vmem:[#allocation2 + $0x30] sm:$0xff] %vm377, -inf
        %385 = vst.msk [vmem:[#allocation2 + $0x38] sm:$0xff] %vm377, -inf
        %386 = vst.msk [vmem:[#allocation2 + $0x40] sm:$0xff] %vm377, -inf
        %387 = vst.msk [vmem:[#allocation2 + $0x48] sm:$0xff] %vm377, -inf
        %388 = vst.msk [vmem:[#allocation2 + $0x50] sm:$0xff] %vm377, -inf
        %389 = vst.msk [vmem:[#allocation2 + $0x58] sm:$0xff] %vm377, -inf
        %390 = vst.msk [vmem:[#allocation2 + $0x60] sm:$0xff] %vm377, -inf
        %391 = vst.msk [vmem:[#allocation2 + $0x68] sm:$0xff] %vm377, -inf
        %392 = vst.msk [vmem:[#allocation2 + $0x70] sm:$0xff] %vm377, -inf
        %393 = vst.msk [vmem:[#allocation2 + $0x78] sm:$0xff] %vm377, -inf
        %394 = vst.msk [vmem:[#allocation3] sm:$0xff] %vm377, 0.0
        %395 = vst.msk [vmem:[#allocation3 + $0x8] sm:$0xff] %vm377, 0.0
        %396 = vst.msk [vmem:[#allocation3 + $0x10] sm:$0xff] %vm377, 0.0
        %397 = vst.msk [vmem:[#allocation3 + $0x18] sm:$0xff] %vm377, 0.0
        %398 = vst.msk [vmem:[#allocation3 + $0x20] sm:$0xff] %vm377, 0.0
        %399 = vst.msk [vmem:[#allocation3 + $0x28] sm:$0xff] %vm377, 0.0
        %400 = vst.msk [vmem:[#allocation3 + $0x30] sm:$0xff] %vm377, 0.0
        %401 = vst.msk [vmem:[#allocation3 + $0x38] sm:$0xff] %vm377, 0.0
        %402 = vst.msk [vmem:[#allocation3 + $0x40] sm:$0xff] %vm377, 0.0
        %403 = vst.msk [vmem:[#allocation3 + $0x48] sm:$0xff] %vm377, 0.0
        %404 = vst.msk [vmem:[#allocation3 + $0x50] sm:$0xff] %vm377, 0.0
        %405 = vst.msk [vmem:[#allocation3 + $0x58] sm:$0xff] %vm377, 0.0
        %406 = vst.msk [vmem:[#allocation3 + $0x60] sm:$0xff] %vm377, 0.0
        %407 = vst.msk [vmem:[#allocation3 + $0x68] sm:$0xff] %vm377, 0.0
        %408 = vst.msk [vmem:[#allocation3 + $0x70] sm:$0xff] %vm377, 0.0
        %409 = vst.msk [vmem:[#allocation3 + $0x78] sm:$0xff] %vm377, 0.0
        %vm410 = vcmask 261120
        %411 = vst.msk [vmem:[#allocation4] sm:$0xff] %vm410, 0.0
        %412 = vst.msk [vmem:[#allocation4 + $0x8] sm:$0xff] %vm410, 0.0
        %413 = vst.msk [vmem:[#allocation4 + $0x10] sm:$0xff] %vm410, 0.0
        %414 = vst.msk [vmem:[#allocation4 + $0x18] sm:$0xff] %vm410, 0.0
        %415 = vst.msk [vmem:[#allocation4 + $0x20] sm:$0xff] %vm410, 0.0
        %416 = vst.msk [vmem:[#allocation4 + $0x28] sm:$0xff] %vm410, 0.0
        %417 = vst.msk [vmem:[#allocation4 + $0x30] sm:$0xff] %vm410, 0.0
        %418 = vst.msk [vmem:[#allocation4 + $0x38] sm:$0xff] %vm410, 0.0
        %419 = vst.msk [vmem:[#allocation4 + $0x40] sm:$0xff] %vm410, 0.0
        %420 = vst.msk [vmem:[#allocation4 + $0x48] sm:$0xff] %vm410, 0.0
        %421 = vst.msk [vmem:[#allocation4 + $0x50] sm:$0xff] %vm410, 0.0
        %422 = vst.msk [vmem:[#allocation4 + $0x58] sm:$0xff] %vm410, 0.0
        %423 = vst.msk [vmem:[#allocation4 + $0x60] sm:$0xff] %vm410, 0.0
        %424 = vst.msk [vmem:[#allocation4 + $0x68] sm:$0xff] %vm410, 0.0
        %425 = vst.msk [vmem:[#allocation4 + $0x70] sm:$0xff] %vm410, 0.0
        %426 = vst.msk [vmem:[#allocation4 + $0x78] sm:$0xff] %vm410, 0.0
      $region40: #{tpu_custom_call.1} parent=35 // pred_fallthru
        _
      %v427 = vld [vmem:[%s323] sm:$0xf]
      %v428 = vld [vmem:[%s323 + $0x4] sm:$0xf]
      %v429 = vld [vmem:[%s323 + $0x8] sm:$0xf]
      %v430 = vld [vmem:[%s323 + $0xc] sm:$0xf]
      %v431 = vld [vmem:[%s323 + $0x10] sm:$0xf]
      %v432 = vld [vmem:[%s323 + $0x14] sm:$0xf]
      %v433 = vld [vmem:[%s323 + $0x18] sm:$0xf]
      %v434 = vld [vmem:[%s323 + $0x1c] sm:$0xf]
      %v435 = vld [vmem:[%s323 + $0x20] sm:$0xf]
      %v436 = vld [vmem:[%s323 + $0x24] sm:$0xf]
      %v437 = vld [vmem:[%s323 + $0x28] sm:$0xf]
      %v438 = vld [vmem:[%s323 + $0x2c] sm:$0xf]
      %v439 = vld [vmem:[%s323 + $0x30] sm:$0xf]
      %v440 = vld [vmem:[%s323 + $0x34] sm:$0xf]
      %v441 = vld [vmem:[%s323 + $0x38] sm:$0xf]
      %v442 = vld [vmem:[%s323 + $0x3c] sm:$0xf]
      %v443 = vunpack.c.l.bf16 %v427
      %v444 = vunpack.c.l.bf16 %v428
      %v445 = vunpack.c.l.bf16 %v429
      %v446 = vunpack.c.l.bf16 %v430
      %v447 = vunpack.c.l.bf16 %v431
      %v448 = vunpack.c.l.bf16 %v432
      %v449 = vunpack.c.l.bf16 %v433
      %v450 = vunpack.c.l.bf16 %v434
      %v451 = vunpack.c.l.bf16 %v435
      %v452 = vunpack.c.l.bf16 %v436
      %v453 = vunpack.c.l.bf16 %v437
      %v454 = vunpack.c.l.bf16 %v438
      %v455 = vunpack.c.l.bf16 %v439
      %v456 = vunpack.c.l.bf16 %v440
      %v457 = vunpack.c.l.bf16 %v441
      %v458 = vunpack.c.l.bf16 %v442
      %v459 = vmul.f32 %v443, 0.17675781
      %v460 = vmul.f32 %v444, 0.17675781
      %v461 = vmul.f32 %v445, 0.17675781
      %v462 = vmul.f32 %v446, 0.17675781
      %v463 = vmul.f32 %v447, 0.17675781
      %v464 = vmul.f32 %v448, 0.17675781
      %v465 = vmul.f32 %v449, 0.17675781
      %v466 = vmul.f32 %v450, 0.17675781
      %v467 = vmul.f32 %v451, 0.17675781
      %v468 = vmul.f32 %v452, 0.17675781
      %v469 = vmul.f32 %v453, 0.17675781
      %v470 = vmul.f32 %v454, 0.17675781
      %v471 = vmul.f32 %v455, 0.17675781
      %v472 = vmul.f32 %v456, 0.17675781
      %v473 = vmul.f32 %v457, 0.17675781
      %v474 = vmul.f32 %v458, 0.17675781
      %v475 = vpack.c.bf16 %v460, %v459
      %v476 = vpack.c.bf16 %v462, %v461
      %v477 = vpack.c.bf16 %v464, %v463
      %v478 = vpack.c.bf16 %v466, %v465
      %v479 = vpack.c.bf16 %v468, %v467
      %v480 = vpack.c.bf16 %v470, %v469
      %v481 = vpack.c.bf16 %v472, %v471
      %v482 = vpack.c.bf16 %v474, %v473
      %v483 = vld [vmem:[%s333] sm:$0xf]
      %v484 = vld [vmem:[%s333 + $0x4] sm:$0xf]
      %v485 = vld [vmem:[%s333 + $0x8] sm:$0xf]
      %v486 = vld [vmem:[%s333 + $0xc] sm:$0xf]
      %v487 = vld [vmem:[%s333 + $0x10] sm:$0xf]
      %v488 = vld [vmem:[%s333 + $0x14] sm:$0xf]
      %v489 = vld [vmem:[%s333 + $0x18] sm:$0xf]
      %v490 = vld [vmem:[%s333 + $0x1c] sm:$0xf]
      %v491 = vld [vmem:[%s333 + $0x20] sm:$0xf]
      %v492 = vld [vmem:[%s333 + $0x24] sm:$0xf]
      %v493 = vld [vmem:[%s333 + $0x28] sm:$0xf]
      %v494 = vld [vmem:[%s333 + $0x2c] sm:$0xf]
      %v495 = vld [vmem:[%s333 + $0x30] sm:$0xf]
      %v496 = vld [vmem:[%s333 + $0x34] sm:$0xf]
      %v497 = vld [vmem:[%s333 + $0x38] sm:$0xf]
      %v498 = vld [vmem:[%s333 + $0x3c] sm:$0xf]
      %v499 = vld [vmem:[%s333 + $0x40] sm:$0xf]
      %v500 = vld [vmem:[%s333 + $0x44] sm:$0xf]
      %v501 = vld [vmem:[%s333 + $0x48] sm:$0xf]
      %v502 = vld [vmem:[%s333 + $0x4c] sm:$0xf]
      %v503 = vld [vmem:[%s333 + $0x50] sm:$0xf]
      %v504 = vld [vmem:[%s333 + $0x54] sm:$0xf]
      %v505 = vld [vmem:[%s333 + $0x58] sm:$0xf]
      %v506 = vld [vmem:[%s333 + $0x5c] sm:$0xf]
      %v507 = vld [vmem:[%s333 + $0x60] sm:$0xf]
      %v508 = vld [vmem:[%s333 + $0x64] sm:$0xf]
      %v509 = vld [vmem:[%s333 + $0x68] sm:$0xf]
      %v510 = vld [vmem:[%s333 + $0x6c] sm:$0xf]
      %v511 = vld [vmem:[%s333 + $0x70] sm:$0xf]
      %v512 = vld [vmem:[%s333 + $0x74] sm:$0xf]
      %v513 = vld [vmem:[%s333 + $0x78] sm:$0xf]
      %v514 = vld [vmem:[%s333 + $0x7c] sm:$0xf]
      %v515 = vld [vmem:[%s343] sm:$0xf]
      %v516 = vld [vmem:[%s343 + $0x4] sm:$0xf]
      %v517 = vld [vmem:[%s343 + $0x8] sm:$0xf]
      %v518 = vld [vmem:[%s343 + $0xc] sm:$0xf]
      %v519 = vld [vmem:[%s343 + $0x10] sm:$0xf]
      %v520 = vld [vmem:[%s343 + $0x14] sm:$0xf]
      %v521 = vld [vmem:[%s343 + $0x18] sm:$0xf]
      %v522 = vld [vmem:[%s343 + $0x1c] sm:$0xf]
      %v523 = vld [vmem:[%s343 + $0x20] sm:$0xf]
      %v524 = vld [vmem:[%s343 + $0x24] sm:$0xf]
      %v525 = vld [vmem:[%s343 + $0x28] sm:$0xf]
      %v526 = vld [vmem:[%s343 + $0x2c] sm:$0xf]
      %v527 = vld [vmem:[%s343 + $0x30] sm:$0xf]
      %v528 = vld [vmem:[%s343 + $0x34] sm:$0xf]
      %v529 = vld [vmem:[%s343 + $0x38] sm:$0xf]
      %v530 = vld [vmem:[%s343 + $0x3c] sm:$0xf]
      %v531 = vld [vmem:[%s343 + $0x40] sm:$0xf]
      %v532 = vld [vmem:[%s343 + $0x44] sm:$0xf]
      %v533 = vld [vmem:[%s343 + $0x48] sm:$0xf]
      %v534 = vld [vmem:[%s343 + $0x4c] sm:$0xf]
      %v535 = vld [vmem:[%s343 + $0x50] sm:$0xf]
      %v536 = vld [vmem:[%s343 + $0x54] sm:$0xf]
      %v537 = vld [vmem:[%s343 + $0x58] sm:$0xf]
      %v538 = vld [vmem:[%s343 + $0x5c] sm:$0xf]
      %v539 = vld [vmem:[%s343 + $0x60] sm:$0xf]
      %v540 = vld [vmem:[%s343 + $0x64] sm:$0xf]
      %v541 = vld [vmem:[%s343 + $0x68] sm:$0xf]
      %v542 = vld [vmem:[%s343 + $0x6c] sm:$0xf]
      %v543 = vld [vmem:[%s343 + $0x70] sm:$0xf]
      %v544 = vld [vmem:[%s343 + $0x74] sm:$0xf]
      %v545 = vld [vmem:[%s343 + $0x78] sm:$0xf]
      %v546 = vld [vmem:[%s343 + $0x7c] sm:$0xf]
      %v547 = vld [vmem:[%s358] sm:$0xff]
      %v548 = vld [vmem:[%s358 + $0x8] sm:$0xff]
      %v549 = vld [vmem:[%s358 + $0x10] sm:$0xff]
      %v550 = vld [vmem:[%s358 + $0x18] sm:$0xff]
      %v551 = vld [vmem:[%s358 + $0x20] sm:$0xff]
      %v552 = vld [vmem:[%s358 + $0x28] sm:$0xff]
      %v553 = vld [vmem:[%s358 + $0x30] sm:$0xff]
      %v554 = vld [vmem:[%s358 + $0x38] sm:$0xff]
      %vm555 = vnez %v547
      %vm556 = vnez %v548
      %vm557 = vnez %v549
      %vm558 = vnez %v550
      %vm559 = vnez %v551
      %vm560 = vnez %v552
      %vm561 = vnez %v553
      %vm562 = vnez %v554
      %v595 = vunpack.c.l.b16 %v483
      %v596 = vunpack.c.l.b16 %v484
      %v597 = vunpack.c.l.b16 %v485
      %v598 = vunpack.c.l.b16 %v486
      %v599 = vunpack.c.l.b16 %v487
      %v600 = vunpack.c.l.b16 %v488
      %v601 = vunpack.c.l.b16 %v489
      %v602 = vunpack.c.l.b16 %v490
      %v603 = vunpack.c.l.b16 %v491
      %v604 = vunpack.c.l.b16 %v492
      %v605 = vunpack.c.l.b16 %v493
      %v606 = vunpack.c.l.b16 %v494
      %v607 = vunpack.c.l.b16 %v495
      %v608 = vunpack.c.l.b16 %v496
      %v609 = vunpack.c.l.b16 %v497
      %v610 = vunpack.c.l.b16 %v498
      %v611 = vunpack.c.l.b16 %v499
      %v612 = vunpack.c.l.b16 %v500
      %v613 = vunpack.c.l.b16 %v501
      %v614 = vunpack.c.l.b16 %v502
      %v615 = vunpack.c.l.b16 %v503
      %v616 = vunpack.c.l.b16 %v504
      %v617 = vunpack.c.l.b16 %v505
      %v618 = vunpack.c.l.b16 %v506
      %v619 = vunpack.c.l.b16 %v507
      %v620 = vunpack.c.l.b16 %v508
      %v621 = vunpack.c.l.b16 %v509
      %v622 = vunpack.c.l.b16 %v510
      %v623 = vunpack.c.l.b16 %v511
      %v624 = vunpack.c.l.b16 %v512
      %v625 = vunpack.c.l.b16 %v513
      %v626 = vunpack.c.l.b16 %v514
      %v627 = vpack.c.b16 %v596, %v595
      %v628 = vpack.c.b16 %v598, %v597
      %v629 = vpack.c.b16 %v600, %v599
      %v630 = vpack.c.b16 %v602, %v601
      %v631 = vpack.c.b16 %v604, %v603
      %v632 = vpack.c.b16 %v606, %v605
      %v633 = vpack.c.b16 %v608, %v607
      %v634 = vpack.c.b16 %v610, %v609
      %v635 = vpack.c.b16 %v612, %v611
      %v636 = vpack.c.b16 %v614, %v613
      %v637 = vpack.c.b16 %v616, %v615
      %v638 = vpack.c.b16 %v618, %v617
      %v639 = vpack.c.b16 %v620, %v619
      %v640 = vpack.c.b16 %v622, %v621
      %v641 = vpack.c.b16 %v624, %v623
      %v642 = vpack.c.b16 %v626, %v625
      %vm643 = vcmask 261120
      %v645 = vsel %vm643, %v475, 0
      %v648 = vsel %vm643, %v476, 0
      %v651 = vsel %vm643, %v477, 0
      %v654 = vsel %vm643, %v478, 0
      %v657 = vsel %vm643, %v479, 0
      %v660 = vsel %vm643, %v480, 0
      %v663 = vsel %vm643, %v481, 0
      %v666 = vsel %vm643, %v482, 0
      %v669 = vsel %vm643, %v627, 0
      %v672 = vsel %vm643, %v628, 0
      %v675 = vsel %vm643, %v629, 0
      %v678 = vsel %vm643, %v630, 0
      %v681 = vsel %vm643, %v631, 0
      %v684 = vsel %vm643, %v632, 0
      %v687 = vsel %vm643, %v633, 0
      %v690 = vsel %vm643, %v634, 0
      %v693 = vsel %vm643, %v635, 0
      %v696 = vsel %vm643, %v636, 0
      %v699 = vsel %vm643, %v637, 0
      %v702 = vsel %vm643, %v638, 0
      %v705 = vsel %vm643, %v639, 0
      %v708 = vsel %vm643, %v640, 0
      %v711 = vsel %vm643, %v641, 0
      %v714 = vsel %vm643, %v642, 0
      %716 = vmatpush.bf16.xpose.msra.mxu0 %v690
      %717 = vmatpush.bf16.xpose.msra.mxu0 %v687
      %718 = vmatpush.bf16.xpose.msra.mxu0 %v684
      %719 = vmatpush.bf16.xpose.msra.mxu0 %v681
      %720 = vmatpush.bf16.xpose.msra.mxu0 %v678
      %721 = vmatpush.bf16.xpose.msra.mxu0 %v675
      %722 = vmatpush.bf16.xpose.msra.mxu0 %v672
      %723 = vmatpush.bf16.xpose.msra.mxu0 %v669
      %724 = vmatmul.bf16.gmra.mxu0 %v645
      %v725 = vpop.f32.mrf.mxu0
      %v726 = vadd.f32 0.0, %v725
      %v727 = vpop.f32.mrf.mxu0
      %v728 = vadd.f32 0.0, %v727
      %729 = vmatmul.bf16.gmra.mxu0 %v648
      %v730 = vpop.f32.mrf.mxu0
      %v731 = vadd.f32 0.0, %v730
      %v732 = vpop.f32.mrf.mxu0
      %v733 = vadd.f32 0.0, %v732
      %734 = vmatmul.bf16.gmra.mxu0 %v651
      %v735 = vpop.f32.mrf.mxu0
      %v736 = vadd.f32 0.0, %v735
      %v737 = vpop.f32.mrf.mxu0
      %v738 = vadd.f32 0.0, %v737
      %739 = vmatmul.bf16.gmra.mxu0 %v654
      %v740 = vpop.f32.mrf.mxu0
      %v741 = vadd.f32 0.0, %v740
      %v742 = vpop.f32.mrf.mxu0
      %v743 = vadd.f32 0.0, %v742
      %744 = vmatmul.bf16.gmra.mxu0 %v657
      %v745 = vpop.f32.mrf.mxu0
      %v746 = vadd.f32 0.0, %v745
      %v747 = vpop.f32.mrf.mxu0
      %v748 = vadd.f32 0.0, %v747
      %749 = vmatmul.bf16.gmra.mxu0 %v660
      %v750 = vpop.f32.mrf.mxu0
      %v751 = vadd.f32 0.0, %v750
      %v752 = vpop.f32.mrf.mxu0
      %v753 = vadd.f32 0.0, %v752
      %754 = vmatmul.bf16.gmra.mxu0 %v663
      %v755 = vpop.f32.mrf.mxu0
      %v756 = vadd.f32 0.0, %v755
      %v757 = vpop.f32.mrf.mxu0
      %v758 = vadd.f32 0.0, %v757
      %759 = vmatmul.bf16.gmra.mxu0 %v666
      %v760 = vpop.f32.mrf.mxu0
      %v761 = vadd.f32 0.0, %v760
      %v762 = vpop.f32.mrf.mxu0
      %v763 = vadd.f32 0.0, %v762
      %764 = vdwg.mxu0
      %765 = vmatpush.bf16.xpose.msra.mxu0 %v714
      %766 = vmatpush.bf16.xpose.msra.mxu0 %v711
      %767 = vmatpush.bf16.xpose.msra.mxu0 %v708
      %768 = vmatpush.bf16.xpose.msra.mxu0 %v705
      %769 = vmatpush.bf16.xpose.msra.mxu0 %v702
      %770 = vmatpush.bf16.xpose.msra.mxu0 %v699
      %771 = vmatpush.bf16.xpose.msra.mxu0 %v696
      %772 = vmatpush.bf16.xpose.msra.mxu0 %v693
      %773 = vmatmul.bf16.gmra.mxu0 %v645
      %v774 = vpop.f32.mrf.mxu0
      %v775 = vadd.f32 0.0, %v774
      %v776 = vpop.f32.mrf.mxu0
      %v777 = vadd.f32 0.0, %v776
      %778 = vmatmul.bf16.gmra.mxu0 %v648
      %v779 = vpop.f32.mrf.mxu0
      %v780 = vadd.f32 0.0, %v779
      %v781 = vpop.f32.mrf.mxu0
      %v782 = vadd.f32 0.0, %v781
      %783 = vmatmul.bf16.gmra.mxu0 %v651
      %v784 = vpop.f32.mrf.mxu0
      %v785 = vadd.f32 0.0, %v784
      %v786 = vpop.f32.mrf.mxu0
      %v787 = vadd.f32 0.0, %v786
      %788 = vmatmul.bf16.gmra.mxu0 %v654
      %v789 = vpop.f32.mrf.mxu0
      %v790 = vadd.f32 0.0, %v789
      %v791 = vpop.f32.mrf.mxu0
      %v792 = vadd.f32 0.0, %v791
      %793 = vmatmul.bf16.gmra.mxu0 %v657
      %v794 = vpop.f32.mrf.mxu0
      %v795 = vadd.f32 0.0, %v794
      %v796 = vpop.f32.mrf.mxu0
      %v797 = vadd.f32 0.0, %v796
      %798 = vmatmul.bf16.gmra.mxu0 %v660
      %v799 = vpop.f32.mrf.mxu0
      %v800 = vadd.f32 0.0, %v799
      %v801 = vpop.f32.mrf.mxu0
      %v802 = vadd.f32 0.0, %v801
      %803 = vmatmul.bf16.gmra.mxu0 %v663
      %v804 = vpop.f32.mrf.mxu0
      %v805 = vadd.f32 0.0, %v804
      %v806 = vpop.f32.mrf.mxu0
      %v807 = vadd.f32 0.0, %v806
      %808 = vmatmul.bf16.gmra.mxu0 %v666
      %v809 = vpop.f32.mrf.mxu0
      %v810 = vadd.f32 0.0, %v809
      %v811 = vpop.f32.mrf.mxu0
      %v812 = vadd.f32 0.0, %v811
      %813 = vdwg.mxu0
      %v814 = vsel %vm555, 16843009, 0
      %v815 = vsel %vm556, 16843009, 0
      %v816 = vsel %vm557, 16843009, 0
      %v817 = vsel %vm558, 16843009, 0
      %v818 = vsel %vm559, 16843009, 0
      %v819 = vsel %vm560, 16843009, 0
      %v820 = vsel %vm561, 16843009, 0
      %v821 = vsel %vm562, 16843009, 0
      %v822 = vunpack.c.0.s8 %v814
      %v823 = vunpack.c.0.s8 %v815
      %v824 = vunpack.c.1.s8 %v814
      %v825 = vunpack.c.1.s8 %v815
      %v826 = vunpack.c.2.s8 %v814
      %v827 = vunpack.c.2.s8 %v815
      %v828 = vunpack.c.3.s8 %v814
      %v829 = vunpack.c.3.s8 %v815
      %v830 = vunpack.c.0.s8 %v816
      %v831 = vunpack.c.0.s8 %v817
      %v832 = vunpack.c.1.s8 %v816
      %v833 = vunpack.c.1.s8 %v817
      %v834 = vunpack.c.2.s8 %v816
      %v835 = vunpack.c.2.s8 %v817
      %v836 = vunpack.c.3.s8 %v816
      %v837 = vunpack.c.3.s8 %v817
      %v838 = vunpack.c.0.s8 %v818
      %v839 = vunpack.c.0.s8 %v819
      %v840 = vunpack.c.1.s8 %v818
      %v841 = vunpack.c.1.s8 %v819
      %v842 = vunpack.c.2.s8 %v818
      %v843 = vunpack.c.2.s8 %v819
      %v844 = vunpack.c.3.s8 %v818
      %v845 = vunpack.c.3.s8 %v819
      %v846 = vunpack.c.0.s8 %v820
      %v847 = vunpack.c.0.s8 %v821
      %v848 = vunpack.c.1.s8 %v820
      %v849 = vunpack.c.1.s8 %v821
      %v850 = vunpack.c.2.s8 %v820
      %v851 = vunpack.c.2.s8 %v821
      %v852 = vunpack.c.3.s8 %v820
      %v853 = vunpack.c.3.s8 %v821
      %v854 = vpack.c.b16 %v823, %v822
      %v855 = vpack.c.b8 %v854, %v854
      %v856 = vpack.c.b16 %v825, %v824
      %v857 = vpack.c.b8 %v856, %v856
      %v858 = vpack.c.b16 %v827, %v826
      %v859 = vpack.c.b8 %v858, %v858
      %v860 = vpack.c.b16 %v829, %v828
      %v861 = vpack.c.b8 %v860, %v860
      %v862 = vpack.c.b16 %v831, %v830
      %v863 = vpack.c.b8 %v862, %v862
      %v864 = vpack.c.b16 %v833, %v832
      %v865 = vpack.c.b8 %v864, %v864
      %v866 = vpack.c.b16 %v835, %v834
      %v867 = vpack.c.b8 %v866, %v866
      %v868 = vpack.c.b16 %v837, %v836
      %v869 = vpack.c.b8 %v868, %v868
      %v870 = vpack.c.b16 %v839, %v838
      %v871 = vpack.c.b8 %v870, %v870
      %v872 = vpack.c.b16 %v841, %v840
      %v873 = vpack.c.b8 %v872, %v872
      %v874 = vpack.c.b16 %v843, %v842
      %v875 = vpack.c.b8 %v874, %v874
      %v876 = vpack.c.b16 %v845, %v844
      %v877 = vpack.c.b8 %v876, %v876
      %v878 = vpack.c.b16 %v847, %v846
      %v879 = vpack.c.b8 %v878, %v878
      %v880 = vpack.c.b16 %v849, %v848
      %v881 = vpack.c.b8 %v880, %v880
      %v882 = vpack.c.b16 %v851, %v850
      %v883 = vpack.c.b8 %v882, %v882
      %v884 = vpack.c.b16 %v853, %v852
      %v885 = vpack.c.b8 %v884, %v884
      %vm886 = vnez %v855
      %vm887 = vnez %v857
      %vm888 = vnez %v859
      %vm889 = vnez %v861
      %vm890 = vnez %v863
      %vm891 = vnez %v865
      %vm892 = vnez %v867
      %vm893 = vnez %v869
      %vm894 = vnez %v871
      %vm895 = vnez %v873
      %vm896 = vnez %v875
      %vm897 = vnez %v877
      %vm898 = vnez %v879
      %vm899 = vnez %v881
      %vm900 = vnez %v883
      %vm901 = vnez %v885
      %v902 = vsel %vm886, 16843009, 0
      %v903 = vsel %vm887, 16843009, 0
      %v904 = vsel %vm888, 16843009, 0
      %v905 = vsel %vm889, 16843009, 0
      %v906 = vsel %vm890, 16843009, 0
      %v907 = vsel %vm891, 16843009, 0
      %v908 = vsel %vm892, 16843009, 0
      %v909 = vsel %vm893, 16843009, 0
      %v910 = vsel %vm894, 16843009, 0
      %v911 = vsel %vm895, 16843009, 0
      %v912 = vsel %vm896, 16843009, 0
      %v913 = vsel %vm897, 16843009, 0
      %v914 = vsel %vm898, 16843009, 0
      %v915 = vsel %vm899, 16843009, 0
      %v916 = vsel %vm900, 16843009, 0
      %v917 = vsel %vm901, 16843009, 0
      %v918 = vunpack.c.0.s8 %v902
      %v919 = vunpack.c.1.s8 %v902
      %v920 = vunpack.c.0.s8 %v903
      %v921 = vunpack.c.1.s8 %v903
      %v922 = vunpack.c.0.s8 %v904
      %v923 = vunpack.c.1.s8 %v904
      %v924 = vunpack.c.0.s8 %v905
      %v925 = vunpack.c.1.s8 %v905
      %v926 = vunpack.c.0.s8 %v906
      %v927 = vunpack.c.1.s8 %v906
      %v928 = vunpack.c.0.s8 %v907
      %v929 = vunpack.c.1.s8 %v907
      %v930 = vunpack.c.0.s8 %v908
      %v931 = vunpack.c.1.s8 %v908
      %v932 = vunpack.c.0.s8 %v909
      %v933 = vunpack.c.1.s8 %v909
      %v934 = vunpack.c.0.s8 %v910
      %v935 = vunpack.c.1.s8 %v910
      %v936 = vunpack.c.0.s8 %v911
      %v937 = vunpack.c.1.s8 %v911
      %v938 = vunpack.c.0.s8 %v912
      %v939 = vunpack.c.1.s8 %v912
      %v940 = vunpack.c.0.s8 %v913
      %v941 = vunpack.c.1.s8 %v913
      %v942 = vunpack.c.0.s8 %v914
      %v943 = vunpack.c.1.s8 %v914
      %v944 = vunpack.c.0.s8 %v915
      %v945 = vunpack.c.1.s8 %v915
      %v946 = vunpack.c.0.s8 %v916
      %v947 = vunpack.c.1.s8 %v916
      %v948 = vunpack.c.0.s8 %v917
      %v949 = vunpack.c.1.s8 %v917
      %vm950 = vcmp.ne.s32.totalorder %v918, 0
      %vm951 = vcmp.ne.s32.totalorder %v919, 0
      %vm952 = vcmp.ne.s32.totalorder %v920, 0
      %vm953 = vcmp.ne.s32.totalorder %v921, 0
      %vm954 = vcmp.ne.s32.totalorder %v922, 0
      %vm955 = vcmp.ne.s32.totalorder %v923, 0
      %vm956 = vcmp.ne.s32.totalorder %v924, 0
      %vm957 = vcmp.ne.s32.totalorder %v925, 0
      %vm958 = vcmp.ne.s32.totalorder %v926, 0
      %vm959 = vcmp.ne.s32.totalorder %v927, 0
      %vm960 = vcmp.ne.s32.totalorder %v928, 0
      %vm961 = vcmp.ne.s32.totalorder %v929, 0
      %vm962 = vcmp.ne.s32.totalorder %v930, 0
      %vm963 = vcmp.ne.s32.totalorder %v931, 0
      %vm964 = vcmp.ne.s32.totalorder %v932, 0
      %vm965 = vcmp.ne.s32.totalorder %v933, 0
      %vm966 = vcmp.ne.s32.totalorder %v934, 0
      %vm967 = vcmp.ne.s32.totalorder %v935, 0
      %vm968 = vcmp.ne.s32.totalorder %v936, 0
      %vm969 = vcmp.ne.s32.totalorder %v937, 0
      %vm970 = vcmp.ne.s32.totalorder %v938, 0
      %vm971 = vcmp.ne.s32.totalorder %v939, 0
      %vm972 = vcmp.ne.s32.totalorder %v940, 0
      %vm973 = vcmp.ne.s32.totalorder %v941, 0
      %vm974 = vcmp.ne.s32.totalorder %v942, 0
      %vm975 = vcmp.ne.s32.totalorder %v943, 0
      %vm976 = vcmp.ne.s32.totalorder %v944, 0
      %vm977 = vcmp.ne.s32.totalorder %v945, 0
      %vm978 = vcmp.ne.s32.totalorder %v946, 0
      %vm979 = vcmp.ne.s32.totalorder %v947, 0
      %vm980 = vcmp.ne.s32.totalorder %v948, 0
      %vm981 = vcmp.ne.s32.totalorder %v949, 0
      %v982 = vsel %vm950, -1e+30, %v726
      %v983 = vsel %vm951, -1e+30, %v775
      %v984 = vsel %vm952, -1e+30, %v728
      %v985 = vsel %vm953, -1e+30, %v777
      %v986 = vsel %vm954, -1e+30, %v731
      %v987 = vsel %vm955, -1e+30, %v780
      %v988 = vsel %vm956, -1e+30, %v733
      %v989 = vsel %vm957, -1e+30, %v782
      %v990 = vsel %vm958, -1e+30, %v736
      %v991 = vsel %vm959, -1e+30, %v785
      %v992 = vsel %vm960, -1e+30, %v738
      %v993 = vsel %vm961, -1e+30, %v787
      %v994 = vsel %vm962, -1e+30, %v741
      %v995 = vsel %vm963, -1e+30, %v790
      %v996 = vsel %vm964, -1e+30, %v743
      %v997 = vsel %vm965, -1e+30, %v792
      %v998 = vsel %vm966, -1e+30, %v746
      %v999 = vsel %vm967, -1e+30, %v795
      %v1000 = vsel %vm968, -1e+30, %v748
      %v1001 = vsel %vm969, -1e+30, %v797
      %v1002 = vsel %vm970, -1e+30, %v751
      %v1003 = vsel %vm971, -1e+30, %v800
      %v1004 = vsel %vm972, -1e+30, %v753
      %v1005 = vsel %vm973, -1e+30, %v802
      %v1006 = vsel %vm974, -1e+30, %v756
      %v1007 = vsel %vm975, -1e+30, %v805
      %v1008 = vsel %vm976, -1e+30, %v758
      %v1009 = vsel %vm977, -1e+30, %v807
      %v1010 = vsel %vm978, -1e+30, %v761
      %v1011 = vsel %vm979, -1e+30, %v810
      %v1012 = vsel %vm980, -1e+30, %v763
      %v1013 = vsel %vm981, -1e+30, %v812
      %v1014 = vld [vmem:[#allocation2] sm:$0xff]
      %v1015 = vld [vmem:[#allocation2 + $0x8] sm:$0xff]
      %v1016 = vld [vmem:[#allocation2 + $0x10] sm:$0xff]
      %v1017 = vld [vmem:[#allocation2 + $0x18] sm:$0xff]
      %v1018 = vld [vmem:[#allocation2 + $0x20] sm:$0xff]
      %v1019 = vld [vmem:[#allocation2 + $0x28] sm:$0xff]
      %v1020 = vld [vmem:[#allocation2 + $0x30] sm:$0xff]
      %v1021 = vld [vmem:[#allocation2 + $0x38] sm:$0xff]
      %v1022 = vld [vmem:[#allocation2 + $0x40] sm:$0xff]
      %v1023 = vld [vmem:[#allocation2 + $0x48] sm:$0xff]
      %v1024 = vld [vmem:[#allocation2 + $0x50] sm:$0xff]
      %v1025 = vld [vmem:[#allocation2 + $0x58] sm:$0xff]
      %v1026 = vld [vmem:[#allocation2 + $0x60] sm:$0xff]
      %v1027 = vld [vmem:[#allocation2 + $0x68] sm:$0xff]
      %v1028 = vld [vmem:[#allocation2 + $0x70] sm:$0xff]
      %v1029 = vld [vmem:[#allocation2 + $0x78] sm:$0xff]
      %v1030 = vmax.f32 %v982, %v983
      %1031 = vmax.xlane.f32.xlu0 %v1030
      %v1032 = vpop.xlane.xlu0 %1031
      %v1033 = vmax.f32 %v984, %v985
      %1034 = vmax.xlane.f32.xlu0 %v1033
      %v1035 = vpop.xlane.xlu0 %1034
      %v1036 = vmax.f32 %v986, %v987
      %1037 = vmax.xlane.f32.xlu0 %v1036
      %v1038 = vpop.xlane.xlu0 %1037
      %v1039 = vmax.f32 %v988, %v989
      %1040 = vmax.xlane.f32.xlu0 %v1039
      %v1041 = vpop.xlane.xlu0 %1040
      %v1042 = vmax.f32 %v990, %v991
      %1043 = vmax.xlane.f32.xlu0 %v1042
      %v1044 = vpop.xlane.xlu0 %1043
      %v1045 = vmax.f32 %v992, %v993
      %1046 = vmax.xlane.f32.xlu0 %v1045
      %v1047 = vpop.xlane.xlu0 %1046
      %v1048 = vmax.f32 %v994, %v995
      %1049 = vmax.xlane.f32.xlu0 %v1048
      %v1050 = vpop.xlane.xlu0 %1049
      %v1051 = vmax.f32 %v996, %v997
      %1052 = vmax.xlane.f32.xlu0 %v1051
      %v1053 = vpop.xlane.xlu0 %1052
      %v1054 = vmax.f32 %v998, %v999
      %1055 = vmax.xlane.f32.xlu0 %v1054
      %v1056 = vpop.xlane.xlu0 %1055
      %v1057 = vmax.f32 %v1000, %v1001
      %1058 = vmax.xlane.f32.xlu0 %v1057
      %v1059 = vpop.xlane.xlu0 %1058
      %v1060 = vmax.f32 %v1002, %v1003
      %1061 = vmax.xlane.f32.xlu0 %v1060
      %v1062 = vpop.xlane.xlu0 %1061
      %v1063 = vmax.f32 %v1004, %v1005
      %1064 = vmax.xlane.f32.xlu0 %v1063
      %v1065 = vpop.xlane.xlu0 %1064
      %v1066 = vmax.f32 %v1006, %v1007
      %1067 = vmax.xlane.f32.xlu0 %v1066
      %v1068 = vpop.xlane.xlu0 %1067
      %v1069 = vmax.f32 %v1008, %v1009
      %1070 = vmax.xlane.f32.xlu0 %v1069
      %v1071 = vpop.xlane.xlu0 %1070
      %v1072 = vmax.f32 %v1010, %v1011
      %1073 = vmax.xlane.f32.xlu0 %v1072
      %v1074 = vpop.xlane.xlu0 %1073
      %v1075 = vmax.f32 %v1012, %v1013
      %1076 = vmax.xlane.f32.xlu0 %v1075
      %v1077 = vpop.xlane.xlu0 %1076
      %v1078 = vmax.f32 %v1014, %v1032
      %v1079 = vmax.f32 %v1015, %v1035
      %v1080 = vmax.f32 %v1016, %v1038
      %v1081 = vmax.f32 %v1017, %v1041
      %v1082 = vmax.f32 %v1018, %v1044
      %v1083 = vmax.f32 %v1019, %v1047
      %v1084 = vmax.f32 %v1020, %v1050
      %v1085 = vmax.f32 %v1021, %v1053
      %v1086 = vmax.f32 %v1022, %v1056
      %v1087 = vmax.f32 %v1023, %v1059
      %v1088 = vmax.f32 %v1024, %v1062
      %v1089 = vmax.f32 %v1025, %v1065
      %v1090 = vmax.f32 %v1026, %v1068
      %v1091 = vmax.f32 %v1027, %v1071
      %v1092 = vmax.f32 %v1028, %v1074
      %v1093 = vmax.f32 %v1029, %v1077
      %v1094 = vsub.f32 %v1014, %v1078
      %v1095 = vsub.f32 %v1015, %v1079
      %v1096 = vsub.f32 %v1016, %v1080
      %v1097 = vsub.f32 %v1017, %v1081
      %v1098 = vsub.f32 %v1018, %v1082
      %v1099 = vsub.f32 %v1019, %v1083
      %v1100 = vsub.f32 %v1020, %v1084
      %v1101 = vsub.f32 %v1021, %v1085
      %v1102 = vsub.f32 %v1022, %v1086
      %v1103 = vsub.f32 %v1023, %v1087
      %v1104 = vsub.f32 %v1024, %v1088
      %v1105 = vsub.f32 %v1025, %v1089
      %v1106 = vsub.f32 %v1026, %v1090
      %v1107 = vsub.f32 %v1027, %v1091
      %v1108 = vsub.f32 %v1028, %v1092
      %v1109 = vsub.f32 %v1029, %v1093
      %v1110 = vmul.f32 %v1094, 1.442695
      %v1111 = vpow.pop %v1110
      %v1112 = vmul.f32 %v1095, 1.442695
      %v1113 = vpow.pop %v1112
      %v1114 = vmul.f32 %v1096, 1.442695
      %v1115 = vpow.pop %v1114
      %v1116 = vmul.f32 %v1097, 1.442695
      %v1117 = vpow.pop %v1116
      %v1118 = vmul.f32 %v1098, 1.442695
      %v1119 = vpow.pop %v1118
      %v1120 = vmul.f32 %v1099, 1.442695
      %v1121 = vpow.pop %v1120
      %v1122 = vmul.f32 %v1100, 1.442695
      %v1123 = vpow.pop %v1122
      %v1124 = vmul.f32 %v1101, 1.442695
      %v1125 = vpow.pop %v1124
      %v1126 = vmul.f32 %v1102, 1.442695
      %v1127 = vpow.pop %v1126
      %v1128 = vmul.f32 %v1103, 1.442695
      %v1129 = vpow.pop %v1128
      %v1130 = vmul.f32 %v1104, 1.442695
      %v1131 = vpow.pop %v1130
      %v1132 = vmul.f32 %v1105, 1.442695
      %v1133 = vpow.pop %v1132
      %v1134 = vmul.f32 %v1106, 1.442695
      %v1135 = vpow.pop %v1134
      %v1136 = vmul.f32 %v1107, 1.442695
      %v1137 = vpow.pop %v1136
      %v1138 = vmul.f32 %v1108, 1.442695
      %v1139 = vpow.pop %v1138
      %v1140 = vmul.f32 %v1109, 1.442695
      %v1141 = vpow.pop %v1140
      %1143 = vset.pattern.permute.xlu0 0
      %1144 = vperm.xlu0 %1143, %v1078
      %v1145 = vpop.permute.xlu0 %1144
      %1148 = vset.pattern.permute.xlu0 0
      %1149 = vperm.xlu0 %1148, %v1079
      %v1150 = vpop.permute.xlu0 %1149
      %1153 = vset.pattern.permute.xlu0 0
      %1154 = vperm.xlu0 %1153, %v1080
      %v1155 = vpop.permute.xlu0 %1154
      %1158 = vset.pattern.permute.xlu0 0
      %1159 = vperm.xlu0 %1158, %v1081
      %v1160 = vpop.permute.xlu0 %1159
      %1163 = vset.pattern.permute.xlu0 0
      %1164 = vperm.xlu0 %1163, %v1082
      %v1165 = vpop.permute.xlu0 %1164
      %1168 = vset.pattern.permute.xlu0 0
      %1169 = vperm.xlu0 %1168, %v1083
      %v1170 = vpop.permute.xlu0 %1169
      %1173 = vset.pattern.permute.xlu0 0
      %1174 = vperm.xlu0 %1173, %v1084
      %v1175 = vpop.permute.xlu0 %1174
      %1178 = vset.pattern.permute.xlu0 0
      %1179 = vperm.xlu0 %1178, %v1085
      %v1180 = vpop.permute.xlu0 %1179
      %1183 = vset.pattern.permute.xlu0 0
      %1184 = vperm.xlu0 %1183, %v1086
      %v1185 = vpop.permute.xlu0 %1184
      %1188 = vset.pattern.permute.xlu0 0
      %1189 = vperm.xlu0 %1188, %v1087
      %v1190 = vpop.permute.xlu0 %1189
      %1193 = vset.pattern.permute.xlu0 0
      %1194 = vperm.xlu0 %1193, %v1088
      %v1195 = vpop.permute.xlu0 %1194
      %1198 = vset.pattern.permute.xlu0 0
      %1199 = vperm.xlu0 %1198, %v1089
      %v1200 = vpop.permute.xlu0 %1199
      %1203 = vset.pattern.permute.xlu0 0
      %1204 = vperm.xlu0 %1203, %v1090
      %v1205 = vpop.permute.xlu0 %1204
      %1208 = vset.pattern.permute.xlu0 0
      %1209 = vperm.xlu0 %1208, %v1091
      %v1210 = vpop.permute.xlu0 %1209
      %1213 = vset.pattern.permute.xlu0 0
      %1214 = vperm.xlu0 %1213, %v1092
      %v1215 = vpop.permute.xlu0 %1214
      %1218 = vset.pattern.permute.xlu0 0
      %1219 = vperm.xlu0 %1218, %v1093
      %v1220 = vpop.permute.xlu0 %1219
      %v1222 = vsub.f32 %v982, %v1145
      %v1223 = vsub.f32 %v983, %v1145
      %v1224 = vsub.f32 %v984, %v1150
      %v1225 = vsub.f32 %v985, %v1150
      %v1226 = vsub.f32 %v986, %v1155
      %v1227 = vsub.f32 %v987, %v1155
      %v1228 = vsub.f32 %v988, %v1160
      %v1229 = vsub.f32 %v989, %v1160
      %v1230 = vsub.f32 %v990, %v1165
      %v1231 = vsub.f32 %v991, %v1165
      %v1232 = vsub.f32 %v992, %v1170
      %v1233 = vsub.f32 %v993, %v1170
      %v1234 = vsub.f32 %v994, %v1175
      %v1235 = vsub.f32 %v995, %v1175
      %v1236 = vsub.f32 %v996, %v1180
      %v1237 = vsub.f32 %v997, %v1180
      %v1238 = vsub.f32 %v998, %v1185
      %v1239 = vsub.f32 %v999, %v1185
      %v1240 = vsub.f32 %v1000, %v1190
      %v1241 = vsub.f32 %v1001, %v1190
      %v1242 = vsub.f32 %v1002, %v1195
      %v1243 = vsub.f32 %v1003, %v1195
      %v1244 = vsub.f32 %v1004, %v1200
      %v1245 = vsub.f32 %v1005, %v1200
      %v1246 = vsub.f32 %v1006, %v1205
      %v1247 = vsub.f32 %v1007, %v1205
      %v1248 = vsub.f32 %v1008, %v1210
      %v1249 = vsub.f32 %v1009, %v1210
      %v1250 = vsub.f32 %v1010, %v1215
      %v1251 = vsub.f32 %v1011, %v1215
      %v1252 = vsub.f32 %v1012, %v1220
      %v1253 = vsub.f32 %v1013, %v1220
      %v1254 = vmul.f32 %v1222, 1.442695
      %v1255 = vpow.pop %v1254
      %v1256 = vmul.f32 %v1223, 1.442695
      %v1257 = vpow.pop %v1256
      %v1258 = vmul.f32 %v1224, 1.442695
      %v1259 = vpow.pop %v1258
      %v1260 = vmul.f32 %v1225, 1.442695
      %v1261 = vpow.pop %v1260
      %v1262 = vmul.f32 %v1226, 1.442695
      %v1263 = vpow.pop %v1262
      %v1264 = vmul.f32 %v1227, 1.442695
      %v1265 = vpow.pop %v1264
      %v1266 = vmul.f32 %v1228, 1.442695
      %v1267 = vpow.pop %v1266
      %v1268 = vmul.f32 %v1229, 1.442695
      %v1269 = vpow.pop %v1268
      %v1270 = vmul.f32 %v1230, 1.442695
      %v1271 = vpow.pop %v1270
      %v1272 = vmul.f32 %v1231, 1.442695
      %v1273 = vpow.pop %v1272
      %v1274 = vmul.f32 %v1232, 1.442695
      %v1275 = vpow.pop %v1274
      %v1276 = vmul.f32 %v1233, 1.442695
      %v1277 = vpow.pop %v1276
      %v1278 = vmul.f32 %v1234, 1.442695
      %v1279 = vpow.pop %v1278
      %v1280 = vmul.f32 %v1235, 1.442695
      %v1281 = vpow.pop %v1280
      %v1282 = vmul.f32 %v1236, 1.442695
      %v1283 = vpow.pop %v1282
      %v1284 = vmul.f32 %v1237, 1.442695
      %v1285 = vpow.pop %v1284
      %v1286 = vmul.f32 %v1238, 1.442695
      %v1287 = vpow.pop %v1286
      %v1288 = vmul.f32 %v1239, 1.442695
      %v1289 = vpow.pop %v1288
      %v1290 = vmul.f32 %v1240, 1.442695
      %v1291 = vpow.pop %v1290
      %v1292 = vmul.f32 %v1241, 1.442695
      %v1293 = vpow.pop %v1292
      %v1294 = vmul.f32 %v1242, 1.442695
      %v1295 = vpow.pop %v1294
      %v1296 = vmul.f32 %v1243, 1.442695
      %v1297 = vpow.pop %v1296
      %v1298 = vmul.f32 %v1244, 1.442695
      %v1299 = vpow.pop %v1298
      %v1300 = vmul.f32 %v1245, 1.442695
      %v1301 = vpow.pop %v1300
      %v1302 = vmul.f32 %v1246, 1.442695
      %v1303 = vpow.pop %v1302
      %v1304 = vmul.f32 %v1247, 1.442695
      %v1305 = vpow.pop %v1304
      %v1306 = vmul.f32 %v1248, 1.442695
      %v1307 = vpow.pop %v1306
      %v1308 = vmul.f32 %v1249, 1.442695
      %v1309 = vpow.pop %v1308
      %v1310 = vmul.f32 %v1250, 1.442695
      %v1311 = vpow.pop %v1310
      %v1312 = vmul.f32 %v1251, 1.442695
      %v1313 = vpow.pop %v1312
      %v1314 = vmul.f32 %v1252, 1.442695
      %v1315 = vpow.pop %v1314
      %v1316 = vmul.f32 %v1253, 1.442695
      %v1317 = vpow.pop %v1316
      %v1318 = vld [vmem:[#allocation3] sm:$0xff]
      %v1319 = vld [vmem:[#allocation3 + $0x8] sm:$0xff]
      %v1320 = vld [vmem:[#allocation3 + $0x10] sm:$0xff]
      %v1321 = vld [vmem:[#allocation3 + $0x18] sm:$0xff]
      %v1322 = vld [vmem:[#allocation3 + $0x20] sm:$0xff]
      %v1323 = vld [vmem:[#allocation3 + $0x28] sm:$0xff]
      %v1324 = vld [vmem:[#allocation3 + $0x30] sm:$0xff]
      %v1325 = vld [vmem:[#allocation3 + $0x38] sm:$0xff]
      %v1326 = vld [vmem:[#allocation3 + $0x40] sm:$0xff]
      %v1327 = vld [vmem:[#allocation3 + $0x48] sm:$0xff]
      %v1328 = vld [vmem:[#allocation3 + $0x50] sm:$0xff]
      %v1329 = vld [vmem:[#allocation3 + $0x58] sm:$0xff]
      %v1330 = vld [vmem:[#allocation3 + $0x60] sm:$0xff]
      %v1331 = vld [vmem:[#allocation3 + $0x68] sm:$0xff]
      %v1332 = vld [vmem:[#allocation3 + $0x70] sm:$0xff]
      %v1333 = vld [vmem:[#allocation3 + $0x78] sm:$0xff]
      %v1334 = vmul.f32 %v1111, %v1318
      %v1335 = vmul.f32 %v1113, %v1319
      %v1336 = vmul.f32 %v1115, %v1320
      %v1337 = vmul.f32 %v1117, %v1321
      %v1338 = vmul.f32 %v1119, %v1322
      %v1339 = vmul.f32 %v1121, %v1323
      %v1340 = vmul.f32 %v1123, %v1324
      %v1341 = vmul.f32 %v1125, %v1325
      %v1342 = vmul.f32 %v1127, %v1326
      %v1343 = vmul.f32 %v1129, %v1327
      %v1344 = vmul.f32 %v1131, %v1328
      %v1345 = vmul.f32 %v1133, %v1329
      %v1346 = vmul.f32 %v1135, %v1330
      %v1347 = vmul.f32 %v1137, %v1331
      %v1348 = vmul.f32 %v1139, %v1332
      %v1349 = vmul.f32 %v1141, %v1333
      %v1350 = vadd.f32 %v1255, %v1257
      %1351 = vadd.xlane.f32.xlu0 %v1350
      %v1352 = vpop.xlane.xlu0 %1351
      %v1353 = vadd.f32 %v1259, %v1261
      %1354 = vadd.xlane.f32.xlu0 %v1353
      %v1355 = vpop.xlane.xlu0 %1354
      %v1356 = vadd.f32 %v1263, %v1265
      %1357 = vadd.xlane.f32.xlu0 %v1356
      %v1358 = vpop.xlane.xlu0 %1357
      %v1359 = vadd.f32 %v1267, %v1269
      %1360 = vadd.xlane.f32.xlu0 %v1359
      %v1361 = vpop.xlane.xlu0 %1360
      %v1362 = vadd.f32 %v1271, %v1273
      %1363 = vadd.xlane.f32.xlu0 %v1362
      %v1364 = vpop.xlane.xlu0 %1363
      %v1365 = vadd.f32 %v1275, %v1277
      %1366 = vadd.xlane.f32.xlu0 %v1365
      %v1367 = vpop.xlane.xlu0 %1366
      %v1368 = vadd.f32 %v1279, %v1281
      %1369 = vadd.xlane.f32.xlu0 %v1368
      %v1370 = vpop.xlane.xlu0 %1369
      %v1371 = vadd.f32 %v1283, %v1285
      %1372 = vadd.xlane.f32.xlu0 %v1371
      %v1373 = vpop.xlane.xlu0 %1372
      %v1374 = vadd.f32 %v1287, %v1289
      %1375 = vadd.xlane.f32.xlu0 %v1374
      %v1376 = vpop.xlane.xlu0 %1375
      %v1377 = vadd.f32 %v1291, %v1293
      %1378 = vadd.xlane.f32.xlu0 %v1377
      %v1379 = vpop.xlane.xlu0 %1378
      %v1380 = vadd.f32 %v1295, %v1297
      %1381 = vadd.xlane.f32.xlu0 %v1380
      %v1382 = vpop.xlane.xlu0 %1381
      %v1383 = vadd.f32 %v1299, %v1301
      %1384 = vadd.xlane.f32.xlu0 %v1383
      %v1385 = vpop.xlane.xlu0 %1384
      %v1386 = vadd.f32 %v1303, %v1305
      %1387 = vadd.xlane.f32.xlu0 %v1386
      %v1388 = vpop.xlane.xlu0 %1387
      %v1389 = vadd.f32 %v1307, %v1309
      %1390 = vadd.xlane.f32.xlu0 %v1389
      %v1391 = vpop.xlane.xlu0 %1390
      %v1392 = vadd.f32 %v1311, %v1313
      %1393 = vadd.xlane.f32.xlu0 %v1392
      %v1394 = vpop.xlane.xlu0 %1393
      %v1395 = vadd.f32 %v1315, %v1317
      %1396 = vadd.xlane.f32.xlu0 %v1395
      %v1397 = vpop.xlane.xlu0 %1396
      %v1398 = vadd.f32 %v1334, %v1352
      %v1399 = vadd.f32 %v1335, %v1355
      %v1400 = vadd.f32 %v1336, %v1358
      %v1401 = vadd.f32 %v1337, %v1361
      %v1402 = vadd.f32 %v1338, %v1364
      %v1403 = vadd.f32 %v1339, %v1367
      %v1404 = vadd.f32 %v1340, %v1370
      %v1405 = vadd.f32 %v1341, %v1373
      %v1406 = vadd.f32 %v1342, %v1376
      %v1407 = vadd.f32 %v1343, %v1379
      %v1408 = vadd.f32 %v1344, %v1382
      %v1409 = vadd.f32 %v1345, %v1385
      %v1410 = vadd.f32 %v1346, %v1388
      %v1411 = vadd.f32 %v1347, %v1391
      %v1412 = vadd.f32 %v1348, %v1394
      %v1413 = vadd.f32 %v1349, %v1397
      %vm1414 = vcmask 7168
      %1415 = vst.msk [vmem:[#allocation3] sm:$0xff] %vm1414, %v1398
      %1416 = vst.msk [vmem:[#allocation3 + $0x8] sm:$0xff] %vm1414, %v1399
      %1417 = vst.msk [vmem:[#allocation3 + $0x10] sm:$0xff] %vm1414, %v1400
      %1418 = vst.msk [vmem:[#allocation3 + $0x18] sm:$0xff] %vm1414, %v1401
      %1419 = vst.msk [vmem:[#allocation3 + $0x20] sm:$0xff] %vm1414, %v1402
      %1420 = vst.msk [vmem:[#allocation3 + $0x28] sm:$0xff] %vm1414, %v1403
      %1421 = vst.msk [vmem:[#allocation3 + $0x30] sm:$0xff] %vm1414, %v1404
      %1422 = vst.msk [vmem:[#allocation3 + $0x38] sm:$0xff] %vm1414, %v1405
      %1423 = vst.msk [vmem:[#allocation3 + $0x40] sm:$0xff] %vm1414, %v1406
      %1424 = vst.msk [vmem:[#allocation3 + $0x48] sm:$0xff] %vm1414, %v1407
      %1425 = vst.msk [vmem:[#allocation3 + $0x50] sm:$0xff] %vm1414, %v1408
      %1426 = vst.msk [vmem:[#allocation3 + $0x58] sm:$0xff] %vm1414, %v1409
      %1427 = vst.msk [vmem:[#allocation3 + $0x60] sm:$0xff] %vm1414, %v1410
      %1428 = vst.msk [vmem:[#allocation3 + $0x68] sm:$0xff] %vm1414, %v1411
      %1429 = vst.msk [vmem:[#allocation3 + $0x70] sm:$0xff] %vm1414, %v1412
      %1430 = vst.msk [vmem:[#allocation3 + $0x78] sm:$0xff] %vm1414, %v1413
      %v1431 = vld [vmem:[#allocation4] sm:$0xff]
      %v1432 = vld [vmem:[#allocation4 + $0x8] sm:$0xff]
      %v1433 = vld [vmem:[#allocation4 + $0x10] sm:$0xff]
      %v1434 = vld [vmem:[#allocation4 + $0x18] sm:$0xff]
      %v1435 = vld [vmem:[#allocation4 + $0x20] sm:$0xff]
      %v1436 = vld [vmem:[#allocation4 + $0x28] sm:$0xff]
      %v1437 = vld [vmem:[#allocation4 + $0x30] sm:$0xff]
      %v1438 = vld [vmem:[#allocation4 + $0x38] sm:$0xff]
      %v1439 = vld [vmem:[#allocation4 + $0x40] sm:$0xff]
      %v1440 = vld [vmem:[#allocation4 + $0x48] sm:$0xff]
      %v1441 = vld [vmem:[#allocation4 + $0x50] sm:$0xff]
      %v1442 = vld [vmem:[#allocation4 + $0x58] sm:$0xff]
      %v1443 = vld [vmem:[#allocation4 + $0x60] sm:$0xff]
      %v1444 = vld [vmem:[#allocation4 + $0x68] sm:$0xff]
      %v1445 = vld [vmem:[#allocation4 + $0x70] sm:$0xff]
      %v1446 = vld [vmem:[#allocation4 + $0x78] sm:$0xff]
      %1448 = vset.pattern.permute.xlu0 0
      %1449 = vperm.xlu0 %1448, %v1111
      %v1450 = vpop.permute.xlu0 %1449
      %1453 = vset.pattern.permute.xlu0 0
      %1454 = vperm.xlu0 %1453, %v1113
      %v1455 = vpop.permute.xlu0 %1454
      %1458 = vset.pattern.permute.xlu0 0
      %1459 = vperm.xlu0 %1458, %v1115
      %v1460 = vpop.permute.xlu0 %1459
      %1463 = vset.pattern.permute.xlu0 0
      %1464 = vperm.xlu0 %1463, %v1117
      %v1465 = vpop.permute.xlu0 %1464
      %1468 = vset.pattern.permute.xlu0 0
      %1469 = vperm.xlu0 %1468, %v1119
      %v1470 = vpop.permute.xlu0 %1469
      %1473 = vset.pattern.permute.xlu0 0
      %1474 = vperm.xlu0 %1473, %v1121
      %v1475 = vpop.permute.xlu0 %1474
      %1478 = vset.pattern.permute.xlu0 0
      %1479 = vperm.xlu0 %1478, %v1123
      %v1480 = vpop.permute.xlu0 %1479
      %1483 = vset.pattern.permute.xlu0 0
      %1484 = vperm.xlu0 %1483, %v1125
      %v1485 = vpop.permute.xlu0 %1484
      %1488 = vset.pattern.permute.xlu0 0
      %1489 = vperm.xlu0 %1488, %v1127
      %v1490 = vpop.permute.xlu0 %1489
      %1493 = vset.pattern.permute.xlu0 0
      %1494 = vperm.xlu0 %1493, %v1129
      %v1495 = vpop.permute.xlu0 %1494
      %1498 = vset.pattern.permute.xlu0 0
      %1499 = vperm.xlu0 %1498, %v1131
      %v1500 = vpop.permute.xlu0 %1499
      %1503 = vset.pattern.permute.xlu0 0
      %1504 = vperm.xlu0 %1503, %v1133
      %v1505 = vpop.permute.xlu0 %1504
      %1508 = vset.pattern.permute.xlu0 0
      %1509 = vperm.xlu0 %1508, %v1135
      %v1510 = vpop.permute.xlu0 %1509
      %1513 = vset.pattern.permute.xlu0 0
      %1514 = vperm.xlu0 %1513, %v1137
      %v1515 = vpop.permute.xlu0 %1514
      %1518 = vset.pattern.permute.xlu0 0
      %1519 = vperm.xlu0 %1518, %v1139
      %v1520 = vpop.permute.xlu0 %1519
      %1523 = vset.pattern.permute.xlu0 0
      %1524 = vperm.xlu0 %1523, %v1141
      %v1525 = vpop.permute.xlu0 %1524
      %v1527 = vmul.f32 %v1450, %v1431
      %v1528 = vmul.f32 %v1455, %v1432
      %v1529 = vmul.f32 %v1460, %v1433
      %v1530 = vmul.f32 %v1465, %v1434
      %v1531 = vmul.f32 %v1470, %v1435
      %v1532 = vmul.f32 %v1475, %v1436
      %v1533 = vmul.f32 %v1480, %v1437
      %v1534 = vmul.f32 %v1485, %v1438
      %v1535 = vmul.f32 %v1490, %v1439
      %v1536 = vmul.f32 %v1495, %v1440
      %v1537 = vmul.f32 %v1500, %v1441
      %v1538 = vmul.f32 %v1505, %v1442
      %v1539 = vmul.f32 %v1510, %v1443
      %v1540 = vmul.f32 %v1515, %v1444
      %v1541 = vmul.f32 %v1520, %v1445
      %v1542 = vmul.f32 %v1525, %v1446
      %v1543 = vpack.c.bf16 %v1259, %v1255
      %v1544 = vpack.c.bf16 %v1261, %v1257
      %v1545 = vpack.c.bf16 %v1267, %v1263
      %v1546 = vpack.c.bf16 %v1269, %v1265
      %v1547 = vpack.c.bf16 %v1275, %v1271
      %v1548 = vpack.c.bf16 %v1277, %v1273
      %v1549 = vpack.c.bf16 %v1283, %v1279
      %v1550 = vpack.c.bf16 %v1285, %v1281
      %v1551 = vpack.c.bf16 %v1291, %v1287
      %v1552 = vpack.c.bf16 %v1293, %v1289
      %v1553 = vpack.c.bf16 %v1299, %v1295
      %v1554 = vpack.c.bf16 %v1301, %v1297
      %v1555 = vpack.c.bf16 %v1307, %v1303
      %v1556 = vpack.c.bf16 %v1309, %v1305
      %v1557 = vpack.c.bf16 %v1315, %v1311
      %v1558 = vpack.c.bf16 %v1317, %v1313
      %v1591 = vunpack.c.l.b16 %v515
      %v1592 = vunpack.c.l.b16 %v516
      %v1593 = vunpack.c.l.b16 %v517
      %v1594 = vunpack.c.l.b16 %v518
      %v1595 = vunpack.c.l.b16 %v519
      %v1596 = vunpack.c.l.b16 %v520
      %v1597 = vunpack.c.l.b16 %v521
      %v1598 = vunpack.c.l.b16 %v522
      %v1599 = vunpack.c.l.b16 %v523
      %v1600 = vunpack.c.l.b16 %v524
      %v1601 = vunpack.c.l.b16 %v525
      %v1602 = vunpack.c.l.b16 %v526
      %v1603 = vunpack.c.l.b16 %v527
      %v1604 = vunpack.c.l.b16 %v528
      %v1605 = vunpack.c.l.b16 %v529
      %v1606 = vunpack.c.l.b16 %v530
      %v1607 = vunpack.c.l.b16 %v531
      %v1608 = vunpack.c.l.b16 %v532
      %v1609 = vunpack.c.l.b16 %v533
      %v1610 = vunpack.c.l.b16 %v534
      %v1611 = vunpack.c.l.b16 %v535
      %v1612 = vunpack.c.l.b16 %v536
      %v1613 = vunpack.c.l.b16 %v537
      %v1614 = vunpack.c.l.b16 %v538
      %v1615 = vunpack.c.l.b16 %v539
      %v1616 = vunpack.c.l.b16 %v540
      %v1617 = vunpack.c.l.b16 %v541
      %v1618 = vunpack.c.l.b16 %v542
      %v1619 = vunpack.c.l.b16 %v543
      %v1620 = vunpack.c.l.b16 %v544
      %v1621 = vunpack.c.l.b16 %v545
      %v1622 = vunpack.c.l.b16 %v546
      %v1623 = vpack.c.b16 %v1592, %v1591
      %v1624 = vpack.c.b16 %v1594, %v1593
      %v1625 = vpack.c.b16 %v1596, %v1595
      %v1626 = vpack.c.b16 %v1598, %v1597
      %v1627 = vpack.c.b16 %v1600, %v1599
      %v1628 = vpack.c.b16 %v1602, %v1601
      %v1629 = vpack.c.b16 %v1604, %v1603
      %v1630 = vpack.c.b16 %v1606, %v1605
      %v1631 = vpack.c.b16 %v1608, %v1607
      %v1632 = vpack.c.b16 %v1610, %v1609
      %v1633 = vpack.c.b16 %v1612, %v1611
      %v1634 = vpack.c.b16 %v1614, %v1613
      %v1635 = vpack.c.b16 %v1616, %v1615
      %v1636 = vpack.c.b16 %v1618, %v1617
      %v1637 = vpack.c.b16 %v1620, %v1619
      %v1638 = vpack.c.b16 %v1622, %v1621
      %1655 = vmatpush.bf16.msra.mxu0 %v1630
      %1656 = vmatpush.bf16.msra.mxu0 %v1629
      %1657 = vmatpush.bf16.msra.mxu0 %v1628
      %1658 = vmatpush.bf16.msra.mxu0 %v1627
      %1659 = vmatpush.bf16.msra.mxu0 %v1626
      %1660 = vmatpush.bf16.msra.mxu0 %v1625
      %1661 = vmatpush.bf16.msra.mxu0 %v1624
      %1662 = vmatpush.bf16.msra.mxu0 %v1623
      %1663 = vmatmul.bf16.gmra.mxu0 %v1543
      %v1664 = vpop.f32.mrf.mxu0
      %v1665 = vadd.f32 0.0, %v1664
      %v1666 = vpop.f32.mrf.mxu0
      %v1667 = vadd.f32 0.0, %v1666
      %1668 = vmatmul.bf16.gmra.mxu0 %v1545
      %v1669 = vpop.f32.mrf.mxu0
      %v1670 = vadd.f32 0.0, %v1669
      %v1671 = vpop.f32.mrf.mxu0
      %v1672 = vadd.f32 0.0, %v1671
      %1673 = vmatmul.bf16.gmra.mxu0 %v1547
      %v1674 = vpop.f32.mrf.mxu0
      %v1675 = vadd.f32 0.0, %v1674
      %v1676 = vpop.f32.mrf.mxu0
      %v1677 = vadd.f32 0.0, %v1676
      %1678 = vmatmul.bf16.gmra.mxu0 %v1549
      %v1679 = vpop.f32.mrf.mxu0
      %v1680 = vadd.f32 0.0, %v1679
      %v1681 = vpop.f32.mrf.mxu0
      %v1682 = vadd.f32 0.0, %v1681
      %1683 = vmatmul.bf16.gmra.mxu0 %v1551
      %v1684 = vpop.f32.mrf.mxu0
      %v1685 = vadd.f32 0.0, %v1684
      %v1686 = vpop.f32.mrf.mxu0
      %v1687 = vadd.f32 0.0, %v1686
      %1688 = vmatmul.bf16.gmra.mxu0 %v1553
      %v1689 = vpop.f32.mrf.mxu0
      %v1690 = vadd.f32 0.0, %v1689
      %v1691 = vpop.f32.mrf.mxu0
      %v1692 = vadd.f32 0.0, %v1691
      %1693 = vmatmul.bf16.gmra.mxu0 %v1555
      %v1694 = vpop.f32.mrf.mxu0
      %v1695 = vadd.f32 0.0, %v1694
      %v1696 = vpop.f32.mrf.mxu0
      %v1697 = vadd.f32 0.0, %v1696
      %1698 = vmatmul.bf16.gmra.mxu0 %v1557
      %v1699 = vpop.f32.mrf.mxu0
      %v1700 = vadd.f32 0.0, %v1699
      %v1701 = vpop.f32.mrf.mxu0
      %v1702 = vadd.f32 0.0, %v1701
      %1703 = vdwg.mxu0
      %1704 = vmatpush.bf16.msra.mxu0 %v1638
      %1705 = vmatpush.bf16.msra.mxu0 %v1637
      %1706 = vmatpush.bf16.msra.mxu0 %v1636
      %1707 = vmatpush.bf16.msra.mxu0 %v1635
      %1708 = vmatpush.bf16.msra.mxu0 %v1634
      %1709 = vmatpush.bf16.msra.mxu0 %v1633
      %1710 = vmatpush.bf16.msra.mxu0 %v1632
      %1711 = vmatpush.bf16.msra.mxu0 %v1631
      %1712 = vmatmul.bf16.gmra.mxu0 %v1544
      %v1713 = vpop.f32.mrf.mxu0
      %v1714 = vadd.f32 %v1665, %v1713
      %v1715 = vpop.f32.mrf.mxu0
      %v1716 = vadd.f32 %v1667, %v1715
      %1717 = vmatmul.bf16.gmra.mxu0 %v1546
      %v1718 = vpop.f32.mrf.mxu0
      %v1719 = vadd.f32 %v1670, %v1718
      %v1720 = vpop.f32.mrf.mxu0
      %v1721 = vadd.f32 %v1672, %v1720
      %1722 = vmatmul.bf16.gmra.mxu0 %v1548
      %v1723 = vpop.f32.mrf.mxu0
      %v1724 = vadd.f32 %v1675, %v1723
      %v1725 = vpop.f32.mrf.mxu0
      %v1726 = vadd.f32 %v1677, %v1725
      %1727 = vmatmul.bf16.gmra.mxu0 %v1550
      %v1728 = vpop.f32.mrf.mxu0
      %v1729 = vadd.f32 %v1680, %v1728
      %v1730 = vpop.f32.mrf.mxu0
      %v1731 = vadd.f32 %v1682, %v1730
      %1732 = vmatmul.bf16.gmra.mxu0 %v1552
      %v1733 = vpop.f32.mrf.mxu0
      %v1734 = vadd.f32 %v1685, %v1733
      %v1735 = vpop.f32.mrf.mxu0
      %v1736 = vadd.f32 %v1687, %v1735
      %1737 = vmatmul.bf16.gmra.mxu0 %v1554
      %v1738 = vpop.f32.mrf.mxu0
      %v1739 = vadd.f32 %v1690, %v1738
      %v1740 = vpop.f32.mrf.mxu0
      %v1741 = vadd.f32 %v1692, %v1740
      %1742 = vmatmul.bf16.gmra.mxu0 %v1556
      %v1743 = vpop.f32.mrf.mxu0
      %v1744 = vadd.f32 %v1695, %v1743
      %v1745 = vpop.f32.mrf.mxu0
      %v1746 = vadd.f32 %v1697, %v1745
      %1747 = vmatmul.bf16.gmra.mxu0 %v1558
      %v1748 = vpop.f32.mrf.mxu0
      %v1749 = vadd.f32 %v1700, %v1748
      %v1750 = vpop.f32.mrf.mxu0
      %v1751 = vadd.f32 %v1702, %v1750
      %1752 = vdwg.mxu0
      %v1753 = vadd.f32 %v1527, %v1714
      %v1754 = vadd.f32 %v1528, %v1716
      %v1755 = vadd.f32 %v1529, %v1719
      %v1756 = vadd.f32 %v1530, %v1721
      %v1757 = vadd.f32 %v1531, %v1724
      %v1758 = vadd.f32 %v1532, %v1726
      %v1759 = vadd.f32 %v1533, %v1729
      %v1760 = vadd.f32 %v1534, %v1731
      %v1761 = vadd.f32 %v1535, %v1734
      %v1762 = vadd.f32 %v1536, %v1736
      %v1763 = vadd.f32 %v1537, %v1739
      %v1764 = vadd.f32 %v1538, %v1741
      %v1765 = vadd.f32 %v1539, %v1744
      %v1766 = vadd.f32 %v1540, %v1746
      %v1767 = vadd.f32 %v1541, %v1749
      %v1768 = vadd.f32 %v1542, %v1751
      %1769 = vst.msk [vmem:[#allocation4] sm:$0xff] %vm643, %v1753
      %1770 = vst.msk [vmem:[#allocation4 + $0x8] sm:$0xff] %vm643, %v1754
      %1771 = vst.msk [vmem:[#allocation4 + $0x10] sm:$0xff] %vm643, %v1755
      %1772 = vst.msk [vmem:[#allocation4 + $0x18] sm:$0xff] %vm643, %v1756
      %1773 = vst.msk [vmem:[#allocation4 + $0x20] sm:$0xff] %vm643, %v1757
      %1774 = vst.msk [vmem:[#allocation4 + $0x28] sm:$0xff] %vm643, %v1758
      %1775 = vst.msk [vmem:[#allocation4 + $0x30] sm:$0xff] %vm643, %v1759
      %1776 = vst.msk [vmem:[#allocation4 + $0x38] sm:$0xff] %vm643, %v1760
      %1777 = vst.msk [vmem:[#allocation4 + $0x40] sm:$0xff] %vm643, %v1761
      %1778 = vst.msk [vmem:[#allocation4 + $0x48] sm:$0xff] %vm643, %v1762
      %1779 = vst.msk [vmem:[#allocation4 + $0x50] sm:$0xff] %vm643, %v1763
      %1780 = vst.msk [vmem:[#allocation4 + $0x58] sm:$0xff] %vm643, %v1764
      %1781 = vst.msk [vmem:[#allocation4 + $0x60] sm:$0xff] %vm643, %v1765
      %1782 = vst.msk [vmem:[#allocation4 + $0x68] sm:$0xff] %vm643, %v1766
      %1783 = vst.msk [vmem:[#allocation4 + $0x70] sm:$0xff] %vm643, %v1767
      %1784 = vst.msk [vmem:[#allocation4 + $0x78] sm:$0xff] %vm643, %v1768
      %1785 = vst.msk [vmem:[#allocation2] sm:$0xff] %vm1414, %v1078
      %1786 = vst.msk [vmem:[#allocation2 + $0x8] sm:$0xff] %vm1414, %v1079
      %1787 = vst.msk [vmem:[#allocation2 + $0x10] sm:$0xff] %vm1414, %v1080
      %1788 = vst.msk [vmem:[#allocation2 + $0x18] sm:$0xff] %vm1414, %v1081
      %1789 = vst.msk [vmem:[#allocation2 + $0x20] sm:$0xff] %vm1414, %v1082
      %1790 = vst.msk [vmem:[#allocation2 + $0x28] sm:$0xff] %vm1414, %v1083
      %1791 = vst.msk [vmem:[#allocation2 + $0x30] sm:$0xff] %vm1414, %v1084
      %1792 = vst.msk [vmem:[#allocation2 + $0x38] sm:$0xff] %vm1414, %v1085
      %1793 = vst.msk [vmem:[#allocation2 + $0x40] sm:$0xff] %vm1414, %v1086
      %1794 = vst.msk [vmem:[#allocation2 + $0x48] sm:$0xff] %vm1414, %v1087
      %1795 = vst.msk [vmem:[#allocation2 + $0x50] sm:$0xff] %vm1414, %v1088
      %1796 = vst.msk [vmem:[#allocation2 + $0x58] sm:$0xff] %vm1414, %v1089
      %1797 = vst.msk [vmem:[#allocation2 + $0x60] sm:$0xff] %vm1414, %v1090
      %1798 = vst.msk [vmem:[#allocation2 + $0x68] sm:$0xff] %vm1414, %v1091
      %1799 = vst.msk [vmem:[#allocation2 + $0x70] sm:$0xff] %vm1414, %v1092
      %1800 = vst.msk [vmem:[#allocation2 + $0x78] sm:$0xff] %vm1414, %v1093
      // Predicated region
      $region41: #{tpu_custom_call.1} parent=35 // pred_check
        %p1801 = pneg %p373
      $region42: #{tpu_custom_call.1} parent=35 // pred_check_branch
        %1803 = sbr.rel (%p1801) target = $region44
      $region43: #{tpu_custom_call.1} parent=35 // pred_region
        %v1804 = vld [vmem:[#allocation3] sm:$0xff]
        %v1805 = vld [vmem:[#allocation3 + $0x8] sm:$0xff]
        %v1806 = vld [vmem:[#allocation3 + $0x10] sm:$0xff]
        %v1807 = vld [vmem:[#allocation3 + $0x18] sm:$0xff]
        %v1808 = vld [vmem:[#allocation3 + $0x20] sm:$0xff]
        %v1809 = vld [vmem:[#allocation3 + $0x28] sm:$0xff]
        %v1810 = vld [vmem:[#allocation3 + $0x30] sm:$0xff]
        %v1811 = vld [vmem:[#allocation3 + $0x38] sm:$0xff]
        %v1812 = vld [vmem:[#allocation3 + $0x40] sm:$0xff]
        %v1813 = vld [vmem:[#allocation3 + $0x48] sm:$0xff]
        %v1814 = vld [vmem:[#allocation3 + $0x50] sm:$0xff]
        %v1815 = vld [vmem:[#allocation3 + $0x58] sm:$0xff]
        %v1816 = vld [vmem:[#allocation3 + $0x60] sm:$0xff]
        %v1817 = vld [vmem:[#allocation3 + $0x68] sm:$0xff]
        %v1818 = vld [vmem:[#allocation3 + $0x70] sm:$0xff]
        %v1819 = vld [vmem:[#allocation3 + $0x78] sm:$0xff]
        %v1820 = vrcp.pop %v1804
        %v1821 = vrcp.pop %v1805
        %v1822 = vrcp.pop %v1806
        %v1823 = vrcp.pop %v1807
        %v1824 = vrcp.pop %v1808
        %v1825 = vrcp.pop %v1809
        %v1826 = vrcp.pop %v1810
        %v1827 = vrcp.pop %v1811
        %v1828 = vrcp.pop %v1812
        %v1829 = vrcp.pop %v1813
        %v1830 = vrcp.pop %v1814
        %v1831 = vrcp.pop %v1815
        %v1832 = vrcp.pop %v1816
        %v1833 = vrcp.pop %v1817
        %v1834 = vrcp.pop %v1818
        %v1835 = vrcp.pop %v1819
        %v1836 = vld [vmem:[#allocation4] sm:$0xff]
        %v1837 = vld [vmem:[#allocation4 + $0x8] sm:$0xff]
        %v1838 = vld [vmem:[#allocation4 + $0x10] sm:$0xff]
        %v1839 = vld [vmem:[#allocation4 + $0x18] sm:$0xff]
        %v1840 = vld [vmem:[#allocation4 + $0x20] sm:$0xff]
        %v1841 = vld [vmem:[#allocation4 + $0x28] sm:$0xff]
        %v1842 = vld [vmem:[#allocation4 + $0x30] sm:$0xff]
        %v1843 = vld [vmem:[#allocation4 + $0x38] sm:$0xff]
        %v1844 = vld [vmem:[#allocation4 + $0x40] sm:$0xff]
        %v1845 = vld [vmem:[#allocation4 + $0x48] sm:$0xff]
        %v1846 = vld [vmem:[#allocation4 + $0x50] sm:$0xff]
        %v1847 = vld [vmem:[#allocation4 + $0x58] sm:$0xff]
        %v1848 = vld [vmem:[#allocation4 + $0x60] sm:$0xff]
        %v1849 = vld [vmem:[#allocation4 + $0x68] sm:$0xff]
        %v1850 = vld [vmem:[#allocation4 + $0x70] sm:$0xff]
        %v1851 = vld [vmem:[#allocation4 + $0x78] sm:$0xff]
        %1853 = vset.pattern.permute.xlu0 0
        %1854 = vperm.xlu0 %1853, %v1820
        %v1855 = vpop.permute.xlu0 %1854
        %1858 = vset.pattern.permute.xlu0 0
        %1859 = vperm.xlu0 %1858, %v1821
        %v1860 = vpop.permute.xlu0 %1859
        %1863 = vset.pattern.permute.xlu0 0
        %1864 = vperm.xlu0 %1863, %v1822
        %v1865 = vpop.permute.xlu0 %1864
        %1868 = vset.pattern.permute.xlu0 0
        %1869 = vperm.xlu0 %1868, %v1823
        %v1870 = vpop.permute.xlu0 %1869
        %1873 = vset.pattern.permute.xlu0 0
        %1874 = vperm.xlu0 %1873, %v1824
        %v1875 = vpop.permute.xlu0 %1874
        %1878 = vset.pattern.permute.xlu0 0
        %1879 = vperm.xlu0 %1878, %v1825
        %v1880 = vpop.permute.xlu0 %1879
        %1883 = vset.pattern.permute.xlu0 0
        %1884 = vperm.xlu0 %1883, %v1826
        %v1885 = vpop.permute.xlu0 %1884
        %1888 = vset.pattern.permute.xlu0 0
        %1889 = vperm.xlu0 %1888, %v1827
        %v1890 = vpop.permute.xlu0 %1889
        %1893 = vset.pattern.permute.xlu0 0
        %1894 = vperm.xlu0 %1893, %v1828
        %v1895 = vpop.permute.xlu0 %1894
        %1898 = vset.pattern.permute.xlu0 0
        %1899 = vperm.xlu0 %1898, %v1829
        %v1900 = vpop.permute.xlu0 %1899
        %1903 = vset.pattern.permute.xlu0 0
        %1904 = vperm.xlu0 %1903, %v1830
        %v1905 = vpop.permute.xlu0 %1904
        %1908 = vset.pattern.permute.xlu0 0
        %1909 = vperm.xlu0 %1908, %v1831
        %v1910 = vpop.permute.xlu0 %1909
        %1913 = vset.pattern.permute.xlu0 0
        %1914 = vperm.xlu0 %1913, %v1832
        %v1915 = vpop.permute.xlu0 %1914
        %1918 = vset.pattern.permute.xlu0 0
        %1919 = vperm.xlu0 %1918, %v1833
        %v1920 = vpop.permute.xlu0 %1919
        %1923 = vset.pattern.permute.xlu0 0
        %1924 = vperm.xlu0 %1923, %v1834
        %v1925 = vpop.permute.xlu0 %1924
        %1928 = vset.pattern.permute.xlu0 0
        %1929 = vperm.xlu0 %1928, %v1835
        %v1930 = vpop.permute.xlu0 %1929
        %v1932 = vmul.f32 %v1836, %v1855
        %v1933 = vmul.f32 %v1837, %v1860
        %v1934 = vmul.f32 %v1838, %v1865
        %v1935 = vmul.f32 %v1839, %v1870
        %v1936 = vmul.f32 %v1840, %v1875
        %v1937 = vmul.f32 %v1841, %v1880
        %v1938 = vmul.f32 %v1842, %v1885
        %v1939 = vmul.f32 %v1843, %v1890
        %v1940 = vmul.f32 %v1844, %v1895
        %v1941 = vmul.f32 %v1845, %v1900
        %v1942 = vmul.f32 %v1846, %v1905
        %v1943 = vmul.f32 %v1847, %v1910
        %v1944 = vmul.f32 %v1848, %v1915
        %v1945 = vmul.f32 %v1849, %v1920
        %v1946 = vmul.f32 %v1850, %v1925
        %v1947 = vmul.f32 %v1851, %v1930
        %1948 = vst.msk [vmem:[%s369] sm:$0xff] %vm643, %v1932
        %1949 = vst.msk [vmem:[%s369 + $0x8] sm:$0xff] %vm643, %v1933
        %1950 = vst.msk [vmem:[%s369 + $0x10] sm:$0xff] %vm643, %v1934
        %1951 = vst.msk [vmem:[%s369 + $0x18] sm:$0xff] %vm643, %v1935
        %1952 = vst.msk [vmem:[%s369 + $0x20] sm:$0xff] %vm643, %v1936
        %1953 = vst.msk [vmem:[%s369 + $0x28] sm:$0xff] %vm643, %v1937
        %1954 = vst.msk [vmem:[%s369 + $0x30] sm:$0xff] %vm643, %v1938
        %1955 = vst.msk [vmem:[%s369 + $0x38] sm:$0xff] %vm643, %v1939
        %1956 = vst.msk [vmem:[%s369 + $0x40] sm:$0xff] %vm643, %v1940
        %1957 = vst.msk [vmem:[%s369 + $0x48] sm:$0xff] %vm643, %v1941
        %1958 = vst.msk [vmem:[%s369 + $0x50] sm:$0xff] %vm643, %v1942
        %1959 = vst.msk [vmem:[%s369 + $0x58] sm:$0xff] %vm643, %v1943
        %1960 = vst.msk [vmem:[%s369 + $0x60] sm:$0xff] %vm643, %v1944
        %1961 = vst.msk [vmem:[%s369 + $0x68] sm:$0xff] %vm643, %v1945
        %1962 = vst.msk [vmem:[%s369 + $0x70] sm:$0xff] %vm643, %v1946
        %1963 = vst.msk [vmem:[%s369 + $0x78] sm:$0xff] %vm643, %v1947
      $region44: #{tpu_custom_call.1} parent=35 // pred_fallthru
        _
      %s1964 = smul.u32 16, %s21
      %p1965 = scmp.lt.s32.totalorder %s20, 1
      %s1966 = scalar_select %p1965, %s20, 1
      %p1967 = scmp.lt.s32.totalorder %s1964, 31
      %s1968 = scalar_select %p1967, %s1964, 31
      %s1969 = smul.addr %s1966, 32
      %s1970 = sadd.s32 %s1968, %s1969
      %s1971 = smul.addr %s1970, 8
      %s1972 = scalar_lea.vmem %s4, %s1971
      // Predicated region
      $region45: #{tpu_custom_call.1} parent=35 // pred_check
        %p1973 = pneg %p168
      $region46: #{tpu_custom_call.1} parent=35 // pred_check_branch
        %1975 = sbr.rel (%p1973) target = $region48
      $region47: #{tpu_custom_call.1} parent=35 // pred_region
        %s1976 = smul.u32 16, %s21
      $region48: #{tpu_custom_call.1} parent=35 // pred_fallthru
        _
    $region36: #{tpu_custom_call.1} parent=5 // pred_fallthru
      _
    %p1977 = scmp.le.s32.totalorder 2, %s10
    // Predicated region
    $region49: #{tpu_custom_call.1} parent=5 // pred_check
      %p1978 = pneg %p1977
    $region50: #{tpu_custom_call.1} parent=5 // pred_check_branch
      %1980 = sbr.rel (%p1978) target = $region52
    $region51: #{tpu_custom_call.1} parent=5 // pred_region
      %s1981 = ssub.s32 %s10, 2
      // Predicated region
      $region53: #{tpu_custom_call.1} parent=51 // pred_check
        %p1982 = pneg %p174
      $region54: #{tpu_custom_call.1} parent=51 // pred_check_branch
        %1984 = sbr.rel (%p1982) target = $region56
      $region55: #{tpu_custom_call.1} parent=51 // pred_region
        %s1985 = smul.u32 16, %s24
        %p1986 = scmp.lt.s32.totalorder %s23, 1
        %s1987 = scalar_select %p1986, %s23, 1
        %p1988 = scmp.lt.s32.totalorder %s1985, 31
        %s1989 = scalar_select %p1988, %s1985, 31
        %s1990 = smul.addr %s1987, 32
        %s1991 = sadd.s32 %s1989, %s1990
        %s1992 = smul.addr %s1991, 8
        %s1993 = scalar_lea.vmem %s4, %s1992
      $region56: #{tpu_custom_call.1} parent=51 // pred_fallthru
        _
    $region52: #{tpu_custom_call.1} parent=5 // pred_fallthru
      _
  $region6: #{tpu_custom_call.1} parent=0 // loop_footer
    %s14 = sadd.s32 1, %s10
  $region7: #{tpu_custom_call.1} parent=0 // loop_footer_branch
    %9 = sbr.rel target = $region3
  $region8: #{tpu_custom_call.1} parent=0 // loop_exit
    _

</llo_original>
